<compile_context>
chip_gen: v6e
topology: v6e:2x2x1
jax: 0.10.0
libtpu: 0.0.40
codegen_flags: <defaults>
</compile_context>

<pallas_src>
import functools

import jax
import jax.numpy as jnp
from jax.experimental import pallas as pl
from jax.experimental.pallas import tpu as pltpu


# ----------------------------------------------------------------------------
# Kernels
# ----------------------------------------------------------------------------
def _mlp_kernel_acc(x_ref, wgu_ref, wd_ref, o_ref, acc_ref, *, block_i):
    """Accumulator-scratch variant (used when output dtype != f32)."""
    j = pl.program_id(1)

    @pl.when(j == 0)
    def _():
        acc_ref[...] = jnp.zeros_like(acc_ref)

    # Single fused MXU dot for gate+up: (bt, H) @ (H, 2*bi) -> (bt, 2*bi) f32.
    gu = jnp.dot(x_ref[...], wgu_ref[...], preferred_element_type=jnp.float32)
    g = gu[:, :block_i]
    u = gu[:, block_i:]
    h = (jax.nn.silu(g) * u).astype(wd_ref.dtype)            # SwiGLU gate
    acc_ref[...] += jnp.dot(h, wd_ref[...], preferred_element_type=jnp.float32)

    @pl.when(j == pl.num_programs(1) - 1)
    def _():
        o_ref[...] = acc_ref[...].astype(o_ref.dtype)


def _mlp_kernel_noacc(x_ref, wgu_ref, wd_ref, o_ref, *, block_i):
    """f32-output variant: accumulate directly into the resident output tile
    (saves block_t*hidden*4 B of VMEM)."""
    j = pl.program_id(1)

    @pl.when(j == 0)
    def _():
        o_ref[...] = jnp.zeros_like(o_ref)

    gu = jnp.dot(x_ref[...], wgu_ref[...], preferred_element_type=jnp.float32)
    g = gu[:, :block_i]
    u = gu[:, block_i:]
    h = (jax.nn.silu(g) * u).astype(wd_ref.dtype)
    o_ref[...] += jnp.dot(h, wd_ref[...], preferred_element_type=jnp.float32)


# ----------------------------------------------------------------------------
# Tiling / VMEM budgeting
# ----------------------------------------------------------------------------
def _round_up(n, q):
    return ((n + q - 1) // q) * q


def _cdiv(a, b):
    return -(-a // b)


def _vmem_capacity_bytes():
    """Per-TensorCore physical VMEM, best-effort detection."""
    try:
        info = pltpu.get_tpu_info()
        cap = int(getattr(info, "vmem_capacity_bytes", 0))
        if cap > 0:
            return cap
    except Exception:
        pass
    try:
        kind = jax.devices()[0].device_kind.lower()
        if "v7" in kind or "7x" in kind:
            return 64 << 20
        if "v2" in kind or "v3" in kind:
            return 16 << 20
        return 128 << 20  # v4 / v5e / v5p / v6e
    except Exception:
        pass
    return 64 << 20  # conservative (v7x per-TensorCore)


def _choose_tiles(tokens, hidden, inter, compute_bytes, out_bytes, acc_bytes,
                  vmem_cap, block_t, block_i):
    """Pick (block_t, block_i, vmem_limit_bytes) from the double-buffered
    footprint model: 2*(x + W_gu + W_down + out) + resident f32 acc."""
    # Bytes per token row of block_t / per intermediate column of block_i.
    row_b = hidden * (2 * compute_bytes + 2 * out_bytes + acc_bytes)
    col_b = hidden * 6 * compute_bytes  # 2*(2 gate/up cols + 1 down row)
    budget = max(vmem_cap - (16 << 20), (vmem_cap * 3) // 4)

    qt = 16 if compute_bytes == 2 else 8      # dtype-aware sublane quantum
    q = 128 if tokens >= 128 else qt          # MXU-friendly quantum when big

    if block_t is None:
        bt_cap = 1024 if vmem_cap >= (96 << 20) else 512   # v5e/v6e vs v7x
        bt = min(bt_cap, _round_up(tokens, q))
        # Shrink until a minimal (bt, 128) tiling fits the budget.
        while bt > q and bt * row_b + 128 * col_b > budget:
            bt = max(q, _round_up(bt // 2, q))
        # Keep >= 2 token blocks so the "parallel" axis can use both v7x cores.
        if _cdiv(tokens, bt) < 2 and tokens >= 2 * qt:
            bt = max(qt, _round_up(_cdiv(tokens, 2), qt))
    else:
        bt = block_t

    if block_i is None:
        rem = budget - bt * row_b
        bi = (rem // col_b) // 128 * 128
        bi = max(128, min(bi, 1024, _round_up(inter, 128)))
    else:
        bi = block_i

    footprint = bt * row_b + bi * col_b
    vmem_limit = max(int(footprint * 1.1) + (2 << 20), 32 << 20)
    vmem_limit = min(vmem_limit, max(vmem_cap - (8 << 20), footprint + (2 << 20)))
    return bt, bi, vmem_limit


# ----------------------------------------------------------------------------
# Wrapper
# ----------------------------------------------------------------------------
def qwen3_mlp(x, w_gate, w_up, w_down, *, block_t=None, block_i=None,
              compute_dtype=jnp.bfloat16):
    """Qwen3MLP forward: down_proj(silu(gate_proj(x)) * up_proj(x)).

    x       : (..., hidden)
    w_gate  : (hidden, intermediate)
    w_up    : (hidden, intermediate)
    w_down  : (intermediate, hidden)
    returns : same shape/dtype as x (matmuls run in `compute_dtype` on the MXU
              with f32 accumulation).
    """
    orig_shape = x.shape
    hidden = orig_shape[-1]
    inter = w_gate.shape[1]
    assert w_gate.shape == (hidden, inter)
    assert w_up.shape == (hidden, inter)
    assert w_down.shape == (inter, hidden)

    out_dtype = jnp.dtype(x.dtype)
    compute_dtype = jnp.dtype(compute_dtype)
    cb = compute_dtype.itemsize
    ob = out_dtype.itemsize
    need_acc = out_dtype != jnp.dtype(jnp.float32)
    acc_bytes = 4 if need_acc else 0

    x2 = x.reshape(-1, hidden).astype(compute_dtype)
    tokens = x2.shape[0]

    bt, bi, vmem_limit = _choose_tiles(
        tokens, hidden, inter, cb, ob, acc_bytes,
        _vmem_capacity_bytes(), block_t, block_i)

    # Zero-pad tokens / intermediate: padded rows/cols contribute exactly 0.
    tp = _round_up(tokens, bt)
    if tp != tokens:
        x2 = jnp.pad(x2, ((0, tp - tokens), (0, 0)))
    ip = _round_up(inter, bi)

    wg = w_gate.astype(compute_dtype)
    wu = w_up.astype(compute_dtype)
    wd = w_down.astype(compute_dtype)
    if ip != inter:
        wg = jnp.pad(wg, ((0, 0), (0, ip - inter)))
        wu = jnp.pad(wu, ((0, 0), (0, ip - inter)))
        wd = jnp.pad(wd, ((0, ip - inter), (0, 0)))

    # Fuse gate/up weights so each j step loads one tile and issues one dot:
    # column block j of w_gu (width 2*bi) is [gate_j | up_j].
    nj = ip // bi
    w_gu = jnp.concatenate(
        [wg.reshape(hidden, nj, bi), wu.reshape(hidden, nj, bi)], axis=-1
    ).reshape(hidden, 2 * ip)

    grid = (tp // bt, nj)
    kernel = functools.partial(
        _mlp_kernel_acc if need_acc else _mlp_kernel_noacc, block_i=bi)
    scratch = [pltpu.VMEM((bt, hidden), jnp.float32)] if need_acc else []

    out = pl.pallas_call(
        kernel,
        out_shape=jax.ShapeDtypeStruct((tp, hidden), out_dtype),
        grid_spec=pltpu.PrefetchScalarGridSpec(
            num_scalar_prefetch=0,
            grid=grid,
            in_specs=[
                pl.BlockSpec((bt, hidden), lambda i, j: (i, 0)),       # x
                pl.BlockSpec((hidden, 2 * bi), lambda i, j: (0, j)),   # [Wg|Wu]
                pl.BlockSpec((bi, hidden), lambda i, j: (j, 0)),       # W_down
            ],
            out_specs=pl.BlockSpec((bt, hidden), lambda i, j: (i, 0)),
            scratch_shapes=scratch,
        ),
        compiler_params=pltpu.CompilerParams(
            dimension_semantics=("parallel", "arbitrary"),
            vmem_limit_bytes=vmem_limit,
        ),
    )(x2, w_gu, wd)

    return out[:tokens].reshape(orig_shape)


# ----------------------------------------------------------------------------
# Pure-JAX reference (same bf16-compute / f32-accumulate recipe as the kernel)
# ----------------------------------------------------------------------------
def _mlp_reference(x, w_gate, w_up, w_down, compute_dtype=jnp.bfloat16):
    hidden = x.shape[-1]
    xc = x.reshape(-1, hidden).astype(compute_dtype)
    g = jnp.dot(xc, w_gate.astype(compute_dtype), preferred_element_type=jnp.float32)
    u = jnp.dot(xc, w_up.astype(compute_dtype), preferred_element_type=jnp.float32)
    h = (jax.nn.silu(g) * u).astype(compute_dtype)
    o = jnp.dot(h, w_down.astype(compute_dtype), preferred_element_type=jnp.float32)
    return o.astype(x.dtype).reshape(x.shape)


if __name__ == "__main__":
    key = jax.random.PRNGKey(0)
    k1, k2, k3, k4 = jax.random.split(key, 4)

    batch, seq, hidden, inter = 2, 64, 256, 512
    x = jax.random.normal(k1, (batch, seq, hidden), dtype=jnp.float32)
    w_gate = jax.random.normal(k2, (hidden, inter), dtype=jnp.float32) / (hidden ** 0.5)
    w_up = jax.random.normal(k3, (hidden, inter), dtype=jnp.float32) / (hidden ** 0.5)
    w_down = jax.random.normal(k4, (inter, hidden), dtype=jnp.float32) / (inter ** 0.5)

    # --- bf16 params / bf16 output: auto tile selection, acc-scratch path ---
    xb = x.astype(jnp.bfloat16)
    wgb, wub, wdb = (w.astype(jnp.bfloat16) for w in (w_gate, w_up, w_down))
    y = jax.block_until_ready(qwen3_mlp(xb, wgb, wub, wdb))
    y_ref = _mlp_reference(xb, wgb, wub, wdb)
    assert y.shape == xb.shape and y.dtype == xb.dtype
    assert jnp.allclose(y.astype(jnp.float32), y_ref.astype(jnp.float32),
                        atol=3e-2, rtol=3e-2), float(
        jnp.max(jnp.abs(y.astype(jnp.float32) - y_ref.astype(jnp.float32))))

    # --- f32 params / f32 output: explicit small tiles exercise multi-block
    #     accumulation, ragged-token padding, and the no-scratch output path ---
    x32 = x[:, :60, :]  # 120 tokens -> padded to a multiple of block_t=64
    y2 = jax.block_until_ready(
        qwen3_mlp(x32, w_gate, w_up, w_down, block_t=64, block_i=128))
    y2_ref = _mlp_reference(x32, w_gate, w_up, w_down)
    assert y2.shape == x32.shape and y2.dtype == x32.dtype
    assert jnp.allclose(y2, y2_ref, atol=2e-2, rtol=2e-2), float(
        jnp.max(jnp.abs(y2 - y2_ref)))

    print("KERNEL_OK")
</pallas_src>

<mosaic_0001>
module attributes {stable_mosaic.version = 11 : i64} {
  func.func @_mlp_kernel_acc(%arg0: i32, %arg1: i32, %arg2: memref<64x256xbf16, #tpu.memory_space<vmem>>, %arg3: memref<256x1024xbf16, #tpu.memory_space<vmem>>, %arg4: memref<512x256xbf16, #tpu.memory_space<vmem>>, %arg5: memref<64x256xbf16, #tpu.memory_space<vmem>>, %arg6: memref<64x256xf32, #tpu.memory_space<vmem>>) attributes {dimension_semantics = [#tpu.dimension_semantics<parallel>, #tpu.dimension_semantics<arbitrary>], iteration_bounds = array<i64: 2, 1>, scalar_prefetch = 0 : i64, scratch_operands = 1 : i64, tpu.core_type = #tpu.core_type<tc>, window_params = [{transform_indices = @transform_0, window_bounds = array<i64: 64, 256>}, {transform_indices = @transform_1, window_bounds = array<i64: 256, 1024>}, {transform_indices = @transform_2, window_bounds = array<i64: 512, 256>}, {transform_indices = @transform_3, window_bounds = array<i64: 64, 256>}]} {
    %c0_i32 = arith.constant 0 : i32
    %0 = arith.cmpi eq, %arg1, %c0_i32 : i32
    %1 = arith.extui %0 : i1 to i32
    %c0_i32_0 = arith.constant 0 : i32
    %2 = arith.cmpi ne, %1, %c0_i32_0 : i32
    scf.if %2 {
      %cst_14 = arith.constant 0.000000e+00 : f32
      %24 = vector.broadcast %cst_14 : f32 to vector<64x256xf32>
      %c0_15 = arith.constant 0 : index
      %c0_16 = arith.constant 0 : index
      %25 = vector.load %arg6[%c0_15, %c0_16] : memref<64x256xf32, #tpu.memory_space<vmem>>, vector<64x256xf32>
      tpu.vector_store %arg6[%c0_15, %c0_16], %24 {strides = array<i32>} : memref<64x256xf32, #tpu.memory_space<vmem>>, vector<64x256xf32>,
    } else {
    }
    %c0 = arith.constant 0 : index
    %c0_1 = arith.constant 0 : index
    %3 = vector.load %arg2[%c0, %c0_1] : memref<64x256xbf16, #tpu.memory_space<vmem>>, vector<64x256xbf16>
    %c0_2 = arith.constant 0 : index
    %c0_3 = arith.constant 0 : index
    %4 = vector.load %arg3[%c0_2, %c0_3] : memref<256x1024xbf16, #tpu.memory_space<vmem>>, vector<256x1024xbf16>
    %cst = arith.constant dense<0.000000e+00> : vector<64x1024xf32>
    %5 = tpu.matmul %3, %4, %cst {dimension_numbers = #tpu.dot_dimension_numbers<[1], [0], [0], [1], [0, 0, 1, 1], [], []>} : vector<64x256xbf16>, vector<256x1024xbf16>, vector<64x1024xf32> -> vector<64x1024xf32>
    %6 = vector.extract_strided_slice %5 {offsets = [0, 0], sizes = [64, 512], strides = [1, 1]} : vector<64x1024xf32> to vector<64x512xf32>
    %7 = vector.extract_strided_slice %5 {offsets = [0, 512], sizes = [64, 512], strides = [1, 1]} : vector<64x1024xf32> to vector<64x512xf32>
    %8 = arith.negf %6 : vector<64x512xf32>
    %9 = math.exp %8 : vector<64x512xf32>
    %cst_4 = arith.constant 1.000000e+00 : f32
    %10 = vector.broadcast %cst_4 : f32 to vector<64x512xf32>
    %11 = arith.addf %10, %9 : vector<64x512xf32>
    %12 = arith.divf %10, %11 : vector<64x512xf32>
    %13 = arith.mulf %6, %12 : vector<64x512xf32>
    %14 = arith.mulf %13, %7 : vector<64x512xf32>
    %15 = arith.truncf %14 : vector<64x512xf32> to vector<64x512xbf16>
    %c0_5 = arith.constant 0 : index
    %c0_6 = arith.constant 0 : index
    %16 = vector.load %arg6[%c0_5, %c0_6] : memref<64x256xf32, #tpu.memory_space<vmem>>, vector<64x256xf32>
    %c0_7 = arith.constant 0 : index
    %c0_8 = arith.constant 0 : index
    %17 = vector.load %arg4[%c0_7, %c0_8] : memref<512x256xbf16, #tpu.memory_space<vmem>>, vector<512x256xbf16>
    %cst_9 = arith.constant dense<0.000000e+00> : vector<64x256xf32>
    %18 = tpu.matmul %15, %17, %cst_9 {dimension_numbers = #tpu.dot_dimension_numbers<[1], [0], [0], [1], [0, 0, 1, 1], [], []>} : vector<64x512xbf16>, vector<512x256xbf16>, vector<64x256xf32> -> vector<64x256xf32>
    %19 = arith.addf %16, %18 : vector<64x256xf32>
    %c0_10 = arith.constant 0 : index
    %c0_11 = arith.constant 0 : index
    %20 = vector.load %arg6[%c0_10, %c0_11] : memref<64x256xf32, #tpu.memory_space<vmem>>, vector<64x256xf32>
    tpu.vector_store %arg6[%c0_10, %c0_11], %19 {strides = array<i32>} : memref<64x256xf32, #tpu.memory_space<vmem>>, vector<64x256xf32>,
    %c0_i32_12 = arith.constant 0 : i32
    %21 = arith.cmpi eq, %arg1, %c0_i32_12 : i32
    %22 = arith.extui %21 : i1 to i32
    %c0_i32_13 = arith.constant 0 : i32
    %23 = arith.cmpi ne, %22, %c0_i32_13 : i32
    scf.if %23 {
      %c0_14 = arith.constant 0 : index
      %c0_15 = arith.constant 0 : index
      %24 = vector.load %arg6[%c0_14, %c0_15] : memref<64x256xf32, #tpu.memory_space<vmem>>, vector<64x256xf32>
      %25 = arith.truncf %24 : vector<64x256xf32> to vector<64x256xbf16>
      %c0_16 = arith.constant 0 : index
      %c0_17 = arith.constant 0 : index
      %26 = vector.load %arg5[%c0_16, %c0_17] : memref<64x256xbf16, #tpu.memory_space<vmem>>, vector<64x256xbf16>
      tpu.vector_store %arg5[%c0_16, %c0_17], %25 {strides = array<i32>} : memref<64x256xbf16, #tpu.memory_space<vmem>>, vector<64x256xbf16>,
    } else {
    }
    return
  }
  func.func @transform_0(%arg0: i32, %arg1: i32) -> (i32, i32) {
    %c0_i32 = arith.constant 0 : i32
    %c0_i32_0 = arith.constant 0 : i32
    return %arg0, %c0_i32 : i32, i32
  }
  func.func @transform_1(%arg0: i32, %arg1: i32) -> (i32, i32) {
    %c0_i32 = arith.constant 0 : i32
    %c0_i32_0 = arith.constant 0 : i32
    return %c0_i32, %arg1 : i32, i32
  }
  func.func @transform_2(%arg0: i32, %arg1: i32) -> (i32, i32) {
    %c0_i32 = arith.constant 0 : i32
    %c0_i32_0 = arith.constant 0 : i32
    return %arg1, %c0_i32 : i32, i32
  }
  func.func @transform_3(%arg0: i32, %arg1: i32) -> (i32, i32) {
    %c0_i32 = arith.constant 0 : i32
    %c0_i32_0 = arith.constant 0 : i32
    return %arg0, %c0_i32 : i32, i32
  }
}

</mosaic_0001>

<llo_original>
// kernel: tpu_custom_call.1
$region0: #{tpu_custom_call.1}
  #allocation0 [shape = 'u32[]', space=smem, size = 0x4, offset = 0x4, fixed_abs, tag = 'smem constant byte address 0x4 - core index']
  #allocation1 [shape = 'u32[144,128]{1,0:T(1,128)}', space=vmem, size = 0x12000, scoped, tag = 'internal scratch']
  #allocation2 [shape = 'f32[64,256]{1,0:T(8,128)}', space=vmem, size = 0x10000, scoped, tag = 'scratch operand']
  %s0 = inlined_call_operand.hbm [shape: bf16[128,256], index: 0, kind: input, shape index: {}]
  %s1 = inlined_call_operand.hbm [shape: bf16[256,1024], index: 1, kind: input, shape index: {}]
  %s2 = inlined_call_operand.hbm [shape: bf16[512,256], index: 2, kind: input, shape index: {}]
  %s3 = inlined_call_operand.hbm [shape: bf16[128,256], index: 3, kind: output, shape index: {}]
  %s4 = sld [smem:[#allocation0]]
  $region65: #{tpu_custom_call.1} parent=0
    _
  %s6 = ssub.s32 1, %s4
  %s7 = scalar_select 0, %s6, %s4
  $region1: #{tpu_custom_call.1} parent=0
    #allocation3 [shape = 'u8[65536]{0}', space=vmem, size = 0x10000, scoped, tag = 'input window, operand 0']
    #allocation4 [shape = 's32[2]{0}', space=sflag, size = 0x8, scoped, tag = 'scoped memory for tpu_custom_call.1']
    #allocation5 [shape = 's32[2]{0}', space=sflag, size = 0x8, scoped, tag = 'scoped memory for tpu_custom_call.1']
    #allocation6 [shape = 'u8[524288]{0}', space=vmem, size = 0x80000, scoped, tag = 'input window, operand 1, single buffered']
    #allocation7 [shape = 's32[1]{0}', space=sflag, size = 0x4, scoped, tag = 'scoped memory for tpu_custom_call.1']
    #allocation8 [shape = 'u8[262144]{0}', space=vmem, size = 0x40000, scoped, tag = 'input window, operand 2, single buffered']
    #allocation9 [shape = 'u8[65536]{0}', space=vmem, size = 0x10000, scoped, tag = 'output window, operand 0']
    %8 = vsyncpa [#allocation4], 0
    %s9 = scalar_lea.sflag [#allocation4], 1
    %10 = vsyncpa %s9, 0
    %11 = vsyncpa [#allocation7], 0
    %12 = vsyncpa [#allocation5], 0
    %s13 = scalar_lea.sflag [#allocation5], 1
    %14 = vsyncpa %s13, 0
    loop: start=0, step=1, limit=4
    $region2: #{tpu_custom_call.1} parent=1 // loop_pre_header
      _
    $region3: #{tpu_custom_call.1} parent=1 // loop_header
      %s16 = sphi 0, %s20
      %p17 = scmp.ge.s32.totalorder %s16, 4
      %s23 = sphi 0, %s35
      %s24 = sphi 0, %s31
      %s25 = sphi 0, %s23
      %s26 = sphi 0, %s24
      %s27 = sphi 0, %s25
      %s28 = sphi 0, %s26
      %s38 = sphi 0, %s40
      %s41 = sphi 0, %s38
      %s42 = sphi 0, %s41
      %s58 = sphi 0, %s42
      %s64 = sphi 0, %s66
      %s67 = sphi 0, %s64
      %s68 = sphi 0, %s67
      %s84 = sphi 0, %s68
      %s90 = sphi 0, %s92
      %s93 = sphi 0, %s90
      %s94 = sphi 0, %s93
      %s110 = sphi 0, %s94
      %s116 = sphi 0, %s118
      %s119 = sphi 0, %s116
      %s120 = sphi 0, %s119
      %s136 = sphi 0, %s120
    $region4: #{tpu_custom_call.1} parent=1 // loop_header_branch
      %19 = sbr.rel (%p17) target = $region8
    $region5: #{tpu_custom_call.1} parent=1 // loop_body
      %s21 = ssub.s32 %s16, 1
      %s22 = ssub.s32 %s16, 2
      %s29 = sadd.s32 1, %s24
      %p30 = scmp.ge.s32.totalorder %s29, 1
      %s31 = scalar_select %p30, 0, %s29
      %s32 = sadd.s32 1, %s23
      %s33 = scalar_select %p30, %s32, %s23
      %p34 = scmp.ge.s32.totalorder %s33, 2
      %s35 = scalar_select %p34, 0, %s33
      %s36 = ssub.s32 %s23, %s35
      %p37 = scmp.eq.s32.totalorder %s36, 0
      %s39 = sadd.s32 %s38, 1
      %s40 = scalar_select %p37, %s38, %s39
      %p43 = pneg %p37
      %p44 = scmp.eq.s32.totalorder %s16, 1
      %p45 = por %p43, %p44
      %p46 = scmp.ne.s32.totalorder %s38, %s41
      %p47 = scmp.eq.s32.totalorder %s16, 0
      %p48 = por %p46, %p47
      %p49 = scmp.ne.s32.totalorder %s38, %s41
      %p50 = scmp.eq.s32.totalorder %s21, 1
      %p51 = por %p49, %p50
      %p52 = scmp.ne.s32.totalorder %s41, %s42
      %p53 = scmp.eq.s32.totalorder %s21, 0
      %p54 = por %p52, %p53
      %p55 = scmp.ne.s32.totalorder %s41, %s42
      %p56 = scmp.eq.s32.totalorder %s22, 1
      %p57 = por %p55, %p56
      %p59 = scmp.ne.s32.totalorder %s42, %s58
      %p60 = scmp.eq.s32.totalorder %s22, 0
      %p61 = por %p59, %p60
      %s62 = ssub.s32 %s24, %s31
      %p63 = scmp.eq.s32.totalorder %s62, 0
      %s65 = sadd.s32 %s64, 1
      %s66 = scalar_select %p63, %s64, %s65
      %p69 = pneg %p63
      %p70 = scmp.eq.s32.totalorder %s16, 1
      %p71 = por %p69, %p70
      %p72 = scmp.ne.s32.totalorder %s64, %s67
      %p73 = scmp.eq.s32.totalorder %s16, 0
      %p74 = por %p72, %p73
      %p75 = scmp.ne.s32.totalorder %s64, %s67
      %p76 = scmp.eq.s32.totalorder %s21, 1
      %p77 = por %p75, %p76
      %p78 = scmp.ne.s32.totalorder %s67, %s68
      %p79 = scmp.eq.s32.totalorder %s21, 0
      %p80 = por %p78, %p79
      %p81 = scmp.ne.s32.totalorder %s67, %s68
      %p82 = scmp.eq.s32.totalorder %s22, 1
      %p83 = por %p81, %p82
      %p85 = scmp.ne.s32.totalorder %s68, %s84
      %p86 = scmp.eq.s32.totalorder %s22, 0
      %p87 = por %p85, %p86
      %s88 = ssub.s32 %s24, %s31
      %p89 = scmp.eq.s32.totalorder %s88, 0
      %s91 = sadd.s32 %s90, 1
      %s92 = scalar_select %p89, %s90, %s91
      %p95 = pneg %p89
      %p96 = scmp.eq.s32.totalorder %s16, 1
      %p97 = por %p95, %p96
      %p98 = scmp.ne.s32.totalorder %s90, %s93
      %p99 = scmp.eq.s32.totalorder %s16, 0
      %p100 = por %p98, %p99
      %p101 = scmp.ne.s32.totalorder %s90, %s93
      %p102 = scmp.eq.s32.totalorder %s21, 1
      %p103 = por %p101, %p102
      %p104 = scmp.ne.s32.totalorder %s93, %s94
      %p105 = scmp.eq.s32.totalorder %s21, 0
      %p106 = por %p104, %p105
      %p107 = scmp.ne.s32.totalorder %s93, %s94
      %p108 = scmp.eq.s32.totalorder %s22, 1
      %p109 = por %p107, %p108
      %p111 = scmp.ne.s32.totalorder %s94, %s110
      %p112 = scmp.eq.s32.totalorder %s22, 0
      %p113 = por %p111, %p112
      %s114 = ssub.s32 %s23, %s35
      %p115 = scmp.eq.s32.totalorder %s114, 0
      %s117 = sadd.s32 %s116, 1
      %s118 = scalar_select %p115, %s116, %s117
      %p121 = pneg %p115
      %p122 = scmp.eq.s32.totalorder %s16, 1
      %p123 = por %p121, %p122
      %p124 = scmp.ne.s32.totalorder %s116, %s119
      %p125 = scmp.eq.s32.totalorder %s16, 0
      %p126 = por %p124, %p125
      %p127 = scmp.ne.s32.totalorder %s116, %s119
      %p128 = scmp.eq.s32.totalorder %s21, 1
      %p129 = por %p127, %p128
      %p130 = scmp.ne.s32.totalorder %s119, %s120
      %p131 = scmp.eq.s32.totalorder %s21, 0
      %p132 = por %p130, %p131
      %p133 = scmp.ne.s32.totalorder %s119, %s120
      %p134 = scmp.eq.s32.totalorder %s22, 1
      %p135 = por %p133, %p134
      %p137 = scmp.ne.s32.totalorder %s120, %s136
      %p138 = scmp.eq.s32.totalorder %s22, 0
      %p139 = por %p137, %p138
      %p140 = scmp.le.s32.totalorder 1, %s16
      %p141 = scmp.lt.s32.totalorder %s16, 3
      %p142 = pnand %p140, %p141
      %p143 = pneg %p142
      // Predicated region
      $region9: #{tpu_custom_call.1} parent=5 // pred_check
        _
      $region10: #{tpu_custom_call.1} parent=5 // pred_check_branch
        %145 = sbr.rel (%p142) target = $region12
      $region11: #{tpu_custom_call.1} parent=5 // pred_region
        %s146 = ssub.s32 %s16, 1
        // Predicated region
        $region13: #{tpu_custom_call.1} parent=11 // pred_check
          %p147 = pneg %p80
        $region14: #{tpu_custom_call.1} parent=11 // pred_check_branch
          %149 = sbr.rel (%p147) target = $region16
        $region15: #{tpu_custom_call.1} parent=11 // pred_region
          %s150 = smul.u32 8, %s26
          %s152 = ssub.s32 16384, 16384
          %153 = vsyncadd [#allocation7], %s152
          %s154 = smul.addr %s150, 64
          %s155 = scalar_lea.hbm %s1, %s154
          %s156 = sshll.u32 [#allocation6], 4
          %s157 = int_to_ptr.vmem [resolvable:$true] %s156
          %162 = dma.hbm_to_vmem [thread:$0]  %s155, 16384, %s157, [#allocation7], 512, 512, 32
        $region16: #{tpu_custom_call.1} parent=11 // pred_fallthru
          _
        // Predicated region
        $region17: #{tpu_custom_call.1} parent=11 // pred_check
          %p163 = pneg %p106
        $region18: #{tpu_custom_call.1} parent=11 // pred_check_branch
          %165 = sbr.rel (%p163) target = $region20
        $region19: #{tpu_custom_call.1} parent=11 // pred_region
          %s166 = smul.u32 64, %s26
          %s168 = ssub.s32 8192, 8192
          %169 = vsyncadd [#allocation7], %s168
          %s170 = smul.addr %s166, 2
          %s171 = smul.addr %s170, 64
          %s172 = scalar_lea.hbm %s2, %s171
          %s173 = sshll.u32 [#allocation8], 4
          %s174 = int_to_ptr.vmem [resolvable:$true] %s173
          %179 = dma.hbm_to_vmem [thread:$0]  %s172, 8192, %s174, [#allocation7], 128, 128, 8
        $region20: #{tpu_custom_call.1} parent=11 // pred_fallthru
          _
      $region12: #{tpu_custom_call.1} parent=5 // pred_fallthru
        _
      %p180 = scmp.lt.s32.totalorder %s16, 2
      // Predicated region
      $region21: #{tpu_custom_call.1} parent=5 // pred_check
        %p181 = pneg %p180
      $region22: #{tpu_custom_call.1} parent=5 // pred_check_branch
        %183 = sbr.rel (%p181) target = $region24
      $region23: #{tpu_custom_call.1} parent=5 // pred_region
        // Predicated region
        $region25: #{tpu_custom_call.1} parent=23 // pred_check
          %p184 = pneg %p48
        $region26: #{tpu_custom_call.1} parent=23 // pred_check_branch
          %186 = sbr.rel (%p184) target = $region28
        $region27: #{tpu_custom_call.1} parent=23 // pred_region
          %s187 = sand.u32 %s38, 1
          %s188 = scalar_lea.sflag [#allocation4], %s187
          %s189 = sand.u32 %s38, 1
          %s190 = smul.addr %s189, 64
          %s191 = scalar_lea.vmem [#allocation3], %s190
          %s192 = smul.u32 8, %s23
          %s194 = ssub.s32 1024, 1024
          %195 = vsyncadd %s188, %s194
          %s196 = smul.addr %s192, 2
          %s197 = smul.addr %s196, 64
          %s198 = scalar_lea.hbm %s0, %s197
          %s199 = sshll.u32 %s191, 4
          %s200 = int_to_ptr.vmem [resolvable:$true] %s199
          %205 = dma.hbm_to_vmem [thread:$0]  %s198, 1024, %s200, %s188, 128, 128, 8
        $region28: #{tpu_custom_call.1} parent=23 // pred_fallthru
          _
      $region24: #{tpu_custom_call.1} parent=5 // pred_fallthru
        _
      %p206 = scmp.le.s32.totalorder 1, %s16
      %p207 = scmp.lt.s32.totalorder %s16, 3
      %p208 = pnand %p206, %p207
      %p209 = pneg %p208
      // Predicated region
      $region29: #{tpu_custom_call.1} parent=5 // pred_check
        _
      $region30: #{tpu_custom_call.1} parent=5 // pred_check_branch
        %211 = sbr.rel (%p208) target = $region32
      $region31: #{tpu_custom_call.1} parent=5 // pred_region
        %s212 = ssub.s32 %s16, 1
        %s213 = sand.u32 %s41, 1
        %s214 = scalar_lea.sflag [#allocation4], %s213
        %s215 = sand.u32 %s41, 1
        %s216 = smul.addr %s215, 64
        %s217 = scalar_lea.vmem [#allocation3], %s216
        // Predicated region
        $region33: #{tpu_custom_call.1} parent=31 // pred_check
          %p218 = pneg %p54
        $region34: #{tpu_custom_call.1} parent=31 // pred_check_branch
          %220 = sbr.rel (%p218) target = $region36
        $region35: #{tpu_custom_call.1} parent=31 // pred_region
          %221 = dma.done %s214, 1024
        $region36: #{tpu_custom_call.1} parent=31 // pred_fallthru
          _
        // Predicated region
        $region37: #{tpu_custom_call.1} parent=31 // pred_check
          %p222 = pneg %p80
        $region38: #{tpu_custom_call.1} parent=31 // pred_check_branch
          %224 = sbr.rel (%p222) target = $region40
        $region39: #{tpu_custom_call.1} parent=31 // pred_region
          %225 = dma.done [#allocation7], 16384
        $region40: #{tpu_custom_call.1} parent=31 // pred_fallthru
          _
        // Predicated region
        $region41: #{tpu_custom_call.1} parent=31 // pred_check
          %p226 = pneg %p106
        $region42: #{tpu_custom_call.1} parent=31 // pred_check_branch
          %228 = sbr.rel (%p226) target = $region44
        $region43: #{tpu_custom_call.1} parent=31 // pred_region
          %229 = dma.done [#allocation7], 8192
        $region44: #{tpu_custom_call.1} parent=31 // pred_fallthru
          _
        %s230 = sand.u32 %s41, 1
        %s231 = scalar_lea.sflag [#allocation4], %s230
        %s232 = sand.u32 %s41, 1
        %s233 = smul.addr %s232, 64
        %s234 = scalar_lea.vmem [#allocation3], %s233
        %p235 = pneg %p54
        %p236 = pneg %p51
        %p237 = pneg %p80
        %p238 = pneg %p77
        %p239 = pneg %p106
        %p240 = pneg %p103
        %p241 = pneg %p132
        %p242 = pneg %p129
        %s243 = sand.u32 %s119, 1
        %s244 = scalar_lea.sflag [#allocation5], %s243
        %s245 = sand.u32 %s119, 1
        %s246 = smul.addr %s245, 64
        %s247 = scalar_lea.vmem [#allocation9], %s246
        %s248 = smul.u32 8, %s25
        %s249 = smul.u32 8, %s26
        %s250 = smul.u32 64, %s26
        %s251 = smul.u32 8, %s25
        %p252 = scmp.eq.s32.totalorder %s26, 0
        // Predicated region
        $region45: #{tpu_custom_call.1} parent=31 // pred_check
          %p253 = pneg %p252
        $region46: #{tpu_custom_call.1} parent=31 // pred_check_branch
          %255 = sbr.rel (%p253) target = $region48
        $region47: #{tpu_custom_call.1} parent=31 // pred_region
          %256 = vst [vmem:[#allocation2] sm:$0xff] 0.0
          %257 = vst [vmem:[#allocation2 + $0x8] sm:$0xff] 0.0
          %258 = vst [vmem:[#allocation2 + $0x10] sm:$0xff] 0.0
          %259 = vst [vmem:[#allocation2 + $0x18] sm:$0xff] 0.0
          %260 = vst [vmem:[#allocation2 + $0x20] sm:$0xff] 0.0
          %261 = vst [vmem:[#allocation2 + $0x28] sm:$0xff] 0.0
          %262 = vst [vmem:[#allocation2 + $0x30] sm:$0xff] 0.0
          %263 = vst [vmem:[#allocation2 + $0x38] sm:$0xff] 0.0
          %264 = vst [vmem:[#allocation2 + $0x40] sm:$0xff] 0.0
          %265 = vst [vmem:[#allocation2 + $0x48] sm:$0xff] 0.0
          %266 = vst [vmem:[#allocation2 + $0x50] sm:$0xff] 0.0
          %267 = vst [vmem:[#allocation2 + $0x58] sm:$0xff] 0.0
          %268 = vst [vmem:[#allocation2 + $0x60] sm:$0xff] 0.0
          %269 = vst [vmem:[#allocation2 + $0x68] sm:$0xff] 0.0
          %270 = vst [vmem:[#allocation2 + $0x70] sm:$0xff] 0.0
          %271 = vst [vmem:[#allocation2 + $0x78] sm:$0xff] 0.0
        $region48: #{tpu_custom_call.1} parent=31 // pred_fallthru
          _
        %v272 = vld [vmem:[%s217] sm:$0xff]
        %v273 = vld [vmem:[%s217 + $0x8] sm:$0xff]
        %v274 = vld [vmem:[%s217 + $0x10] sm:$0xff]
        %v275 = vld [vmem:[%s217 + $0x18] sm:$0xff]
        %v276 = vld [vmem:[%s217 + $0x20] sm:$0xff]
        %v277 = vld [vmem:[%s217 + $0x28] sm:$0xff]
        %v278 = vld [vmem:[%s217 + $0x30] sm:$0xff]
        %v279 = vld [vmem:[%s217 + $0x38] sm:$0xff]
        %v280 = vld [vmem:[#allocation6] sm:$0xff]
        %v281 = vld [vmem:[#allocation6 + $0x8] sm:$0xff]
        %v282 = vld [vmem:[#allocation6 + $0x10] sm:$0xff]
        %v283 = vld [vmem:[#allocation6 + $0x18] sm:$0xff]
        %v284 = vld [vmem:[#allocation6 + $0x20] sm:$0xff]
        %v285 = vld [vmem:[#allocation6 + $0x28] sm:$0xff]
        %v286 = vld [vmem:[#allocation6 + $0x30] sm:$0xff]
        %v287 = vld [vmem:[#allocation6 + $0x38] sm:$0xff]
        %v288 = vld [vmem:[#allocation6 + $0x40] sm:$0xff]
        %v289 = vld [vmem:[#allocation6 + $0x48] sm:$0xff]
        %v290 = vld [vmem:[#allocation6 + $0x50] sm:$0xff]
        %v291 = vld [vmem:[#allocation6 + $0x58] sm:$0xff]
        %v292 = vld [vmem:[#allocation6 + $0x60] sm:$0xff]
        %v293 = vld [vmem:[#allocation6 + $0x68] sm:$0xff]
        %v294 = vld [vmem:[#allocation6 + $0x70] sm:$0xff]
        %v295 = vld [vmem:[#allocation6 + $0x78] sm:$0xff]
        %v296 = vld [vmem:[#allocation6 + $0x80] sm:$0xff]
        %v297 = vld [vmem:[#allocation6 + $0x88] sm:$0xff]
        %v298 = vld [vmem:[#allocation6 + $0x90] sm:$0xff]
        %v299 = vld [vmem:[#allocation6 + $0x98] sm:$0xff]
        %v300 = vld [vmem:[#allocation6 + $0xa0] sm:$0xff]
        %v301 = vld [vmem:[#allocation6 + $0xa8] sm:$0xff]
        %v302 = vld [vmem:[#allocation6 + $0xb0] sm:$0xff]
        %v303 = vld [vmem:[#allocation6 + $0xb8] sm:$0xff]
        %v304 = vld [vmem:[#allocation6 + $0xc0] sm:$0xff]
        %v305 = vld [vmem:[#allocation6 + $0xc8] sm:$0xff]
        %v306 = vld [vmem:[#allocation6 + $0xd0] sm:$0xff]
        %v307 = vld [vmem:[#allocation6 + $0xd8] sm:$0xff]
        %v308 = vld [vmem:[#allocation6 + $0xe0] sm:$0xff]
        %v309 = vld [vmem:[#allocation6 + $0xe8] sm:$0xff]
        %v310 = vld [vmem:[#allocation6 + $0xf0] sm:$0xff]
        %v311 = vld [vmem:[#allocation6 + $0xf8] sm:$0xff]
        %v312 = vld [vmem:[#allocation6 + $0x100] sm:$0xff]
        %v313 = vld [vmem:[#allocation6 + $0x108] sm:$0xff]
        %v314 = vld [vmem:[#allocation6 + $0x110] sm:$0xff]
        %v315 = vld [vmem:[#allocation6 + $0x118] sm:$0xff]
        %v316 = vld [vmem:[#allocation6 + $0x120] sm:$0xff]
        %v317 = vld [vmem:[#allocation6 + $0x128] sm:$0xff]
        %v318 = vld [vmem:[#allocation6 + $0x130] sm:$0xff]
        %v319 = vld [vmem:[#allocation6 + $0x138] sm:$0xff]
        %v320 = vld [vmem:[#allocation6 + $0x140] sm:$0xff]
        %v321 = vld [vmem:[#allocation6 + $0x148] sm:$0xff]
        %v322 = vld [vmem:[#allocation6 + $0x150] sm:$0xff]
        %v323 = vld [vmem:[#allocation6 + $0x158] sm:$0xff]
        %v324 = vld [vmem:[#allocation6 + $0x160] sm:$0xff]
        %v325 = vld [vmem:[#allocation6 + $0x168] sm:$0xff]
        %v326 = vld [vmem:[#allocation6 + $0x170] sm:$0xff]
        %v327 = vld [vmem:[#allocation6 + $0x178] sm:$0xff]
        %v328 = vld [vmem:[#allocation6 + $0x180] sm:$0xff]
        %v329 = vld [vmem:[#allocation6 + $0x188] sm:$0xff]
        %v330 = vld [vmem:[#allocation6 + $0x190] sm:$0xff]
        %v331 = vld [vmem:[#allocation6 + $0x198] sm:$0xff]
        %v332 = vld [vmem:[#allocation6 + $0x1a0] sm:$0xff]
        %v333 = vld [vmem:[#allocation6 + $0x1a8] sm:$0xff]
        %v334 = vld [vmem:[#allocation6 + $0x1b0] sm:$0xff]
        %v335 = vld [vmem:[#allocation6 + $0x1b8] sm:$0xff]
        %v336 = vld [vmem:[#allocation6 + $0x1c0] sm:$0xff]
        %v337 = vld [vmem:[#allocation6 + $0x1c8] sm:$0xff]
        %v338 = vld [vmem:[#allocation6 + $0x1d0] sm:$0xff]
        %v339 = vld [vmem:[#allocation6 + $0x1d8] sm:$0xff]
        %v340 = vld [vmem:[#allocation6 + $0x1e0] sm:$0xff]
        %v341 = vld [vmem:[#allocation6 + $0x1e8] sm:$0xff]
        %v342 = vld [vmem:[#allocation6 + $0x1f0] sm:$0xff]
        %v343 = vld [vmem:[#allocation6 + $0x1f8] sm:$0xff]
        %v344 = vld [vmem:[#allocation6 + $0x200] sm:$0xff]
        %v345 = vld [vmem:[#allocation6 + $0x208] sm:$0xff]
        %v346 = vld [vmem:[#allocation6 + $0x210] sm:$0xff]
        %v347 = vld [vmem:[#allocation6 + $0x218] sm:$0xff]
        %v348 = vld [vmem:[#allocation6 + $0x220] sm:$0xff]
        %v349 = vld [vmem:[#allocation6 + $0x228] sm:$0xff]
        %v350 = vld [vmem:[#allocation6 + $0x230] sm:$0xff]
        %v351 = vld [vmem:[#allocation6 + $0x238] sm:$0xff]
        %v352 = vld [vmem:[#allocation6 + $0x240] sm:$0xff]
        %v353 = vld [vmem:[#allocation6 + $0x248] sm:$0xff]
        %v354 = vld [vmem:[#allocation6 + $0x250] sm:$0xff]
        %v355 = vld [vmem:[#allocation6 + $0x258] sm:$0xff]
        %v356 = vld [vmem:[#allocation6 + $0x260] sm:$0xff]
        %v357 = vld [vmem:[#allocation6 + $0x268] sm:$0xff]
        %v358 = vld [vmem:[#allocation6 + $0x270] sm:$0xff]
        %v359 = vld [vmem:[#allocation6 + $0x278] sm:$0xff]
        %v360 = vld [vmem:[#allocation6 + $0x280] sm:$0xff]
        %v361 = vld [vmem:[#allocation6 + $0x288] sm:$0xff]
        %v362 = vld [vmem:[#allocation6 + $0x290] sm:$0xff]
        %v363 = vld [vmem:[#allocation6 + $0x298] sm:$0xff]
        %v364 = vld [vmem:[#allocation6 + $0x2a0] sm:$0xff]
        %v365 = vld [vmem:[#allocation6 + $0x2a8] sm:$0xff]
        %v366 = vld [vmem:[#allocation6 + $0x2b0] sm:$0xff]
        %v367 = vld [vmem:[#allocation6 + $0x2b8] sm:$0xff]
        %v368 = vld [vmem:[#allocation6 + $0x2c0] sm:$0xff]
        %v369 = vld [vmem:[#allocation6 + $0x2c8] sm:$0xff]
        %v370 = vld [vmem:[#allocation6 + $0x2d0] sm:$0xff]
        %v371 = vld [vmem:[#allocation6 + $0x2d8] sm:$0xff]
        %v372 = vld [vmem:[#allocation6 + $0x2e0] sm:$0xff]
        %v373 = vld [vmem:[#allocation6 + $0x2e8] sm:$0xff]
        %v374 = vld [vmem:[#allocation6 + $0x2f0] sm:$0xff]
        %v375 = vld [vmem:[#allocation6 + $0x2f8] sm:$0xff]
        %v376 = vld [vmem:[#allocation6 + $0x300] sm:$0xff]
        %v377 = vld [vmem:[#allocation6 + $0x308] sm:$0xff]
        %v378 = vld [vmem:[#allocation6 + $0x310] sm:$0xff]
        %v379 = vld [vmem:[#allocation6 + $0x318] sm:$0xff]
        %v380 = vld [vmem:[#allocation6 + $0x320] sm:$0xff]
        %v381 = vld [vmem:[#allocation6 + $0x328] sm:$0xff]
        %v382 = vld [vmem:[#allocation6 + $0x330] sm:$0xff]
        %v383 = vld [vmem:[#allocation6 + $0x338] sm:$0xff]
        %v384 = vld [vmem:[#allocation6 + $0x340] sm:$0xff]
        %v385 = vld [vmem:[#allocation6 + $0x348] sm:$0xff]
        %v386 = vld [vmem:[#allocation6 + $0x350] sm:$0xff]
        %v387 = vld [vmem:[#allocation6 + $0x358] sm:$0xff]
        %v388 = vld [vmem:[#allocation6 + $0x360] sm:$0xff]
        %v389 = vld [vmem:[#allocation6 + $0x368] sm:$0xff]
        %v390 = vld [vmem:[#allocation6 + $0x370] sm:$0xff]
        %v391 = vld [vmem:[#allocation6 + $0x378] sm:$0xff]
        %v392 = vld [vmem:[#allocation6 + $0x380] sm:$0xff]
        %v393 = vld [vmem:[#allocation6 + $0x388] sm:$0xff]
        %v394 = vld [vmem:[#allocation6 + $0x390] sm:$0xff]
        %v395 = vld [vmem:[#allocation6 + $0x398] sm:$0xff]
        %v396 = vld [vmem:[#allocation6 + $0x3a0] sm:$0xff]
        %v397 = vld [vmem:[#allocation6 + $0x3a8] sm:$0xff]
        %v398 = vld [vmem:[#allocation6 + $0x3b0] sm:$0xff]
        %v399 = vld [vmem:[#allocation6 + $0x3b8] sm:$0xff]
        %v400 = vld [vmem:[#allocation6 + $0x3c0] sm:$0xff]
        %v401 = vld [vmem:[#allocation6 + $0x3c8] sm:$0xff]
        %v402 = vld [vmem:[#allocation6 + $0x3d0] sm:$0xff]
        %v403 = vld [vmem:[#allocation6 + $0x3d8] sm:$0xff]
        %v404 = vld [vmem:[#allocation6 + $0x3e0] sm:$0xff]
        %v405 = vld [vmem:[#allocation6 + $0x3e8] sm:$0xff]
        %v406 = vld [vmem:[#allocation6 + $0x3f0] sm:$0xff]
        %v407 = vld [vmem:[#allocation6 + $0x3f8] sm:$0xff]
        %v416 = vunpack.c.l.b16 %v272
        %v417 = vunpack.c.h.b16 %v272
        %v418 = vunpack.c.l.b16 %v273
        %v419 = vunpack.c.h.b16 %v273
        %v420 = vunpack.c.l.b16 %v274
        %v421 = vunpack.c.h.b16 %v274
        %v422 = vunpack.c.l.b16 %v275
        %v423 = vunpack.c.h.b16 %v275
        %v424 = vunpack.c.l.b16 %v276
        %v425 = vunpack.c.h.b16 %v276
        %v426 = vunpack.c.l.b16 %v277
        %v427 = vunpack.c.h.b16 %v277
        %v428 = vunpack.c.l.b16 %v278
        %v429 = vunpack.c.h.b16 %v278
        %v430 = vunpack.c.l.b16 %v279
        %v431 = vunpack.c.h.b16 %v279
        %v432 = vpack.c.b16 %v418, %v416
        %v433 = vpack.c.b16 %v419, %v417
        %v434 = vpack.c.b16 %v422, %v420
        %v435 = vpack.c.b16 %v423, %v421
        %v436 = vpack.c.b16 %v426, %v424
        %v437 = vpack.c.b16 %v427, %v425
        %v438 = vpack.c.b16 %v430, %v428
        %v439 = vpack.c.b16 %v431, %v429
        %v576 = vunpack.c.l.b16 %v280
        %v577 = vunpack.c.h.b16 %v280
        %v578 = vunpack.c.l.b16 %v281
        %v579 = vunpack.c.h.b16 %v281
        %v580 = vunpack.c.l.b16 %v282
        %v581 = vunpack.c.h.b16 %v282
        %v582 = vunpack.c.l.b16 %v283
        %v583 = vunpack.c.h.b16 %v283
        %v584 = vunpack.c.l.b16 %v284
        %v585 = vunpack.c.h.b16 %v284
        %v586 = vunpack.c.l.b16 %v285
        %v587 = vunpack.c.h.b16 %v285
        %v588 = vunpack.c.l.b16 %v286
        %v589 = vunpack.c.h.b16 %v286
        %v590 = vunpack.c.l.b16 %v287
        %v591 = vunpack.c.h.b16 %v287
        %v592 = vunpack.c.l.b16 %v288
        %v593 = vunpack.c.h.b16 %v288
        %v594 = vunpack.c.l.b16 %v289
        %v595 = vunpack.c.h.b16 %v289
        %v596 = vunpack.c.l.b16 %v290
        %v597 = vunpack.c.h.b16 %v290
        %v598 = vunpack.c.l.b16 %v291
        %v599 = vunpack.c.h.b16 %v291
        %v600 = vunpack.c.l.b16 %v292
        %v601 = vunpack.c.h.b16 %v292
        %v602 = vunpack.c.l.b16 %v293
        %v603 = vunpack.c.h.b16 %v293
        %v604 = vunpack.c.l.b16 %v294
        %v605 = vunpack.c.h.b16 %v294
        %v606 = vunpack.c.l.b16 %v295
        %v607 = vunpack.c.h.b16 %v295
        %v608 = vunpack.c.l.b16 %v296
        %v609 = vunpack.c.h.b16 %v296
        %v610 = vunpack.c.l.b16 %v297
        %v611 = vunpack.c.h.b16 %v297
        %v612 = vunpack.c.l.b16 %v298
        %v613 = vunpack.c.h.b16 %v298
        %v614 = vunpack.c.l.b16 %v299
        %v615 = vunpack.c.h.b16 %v299
        %v616 = vunpack.c.l.b16 %v300
        %v617 = vunpack.c.h.b16 %v300
        %v618 = vunpack.c.l.b16 %v301
        %v619 = vunpack.c.h.b16 %v301
        %v620 = vunpack.c.l.b16 %v302
        %v621 = vunpack.c.h.b16 %v302
        %v622 = vunpack.c.l.b16 %v303
        %v623 = vunpack.c.h.b16 %v303
        %v624 = vunpack.c.l.b16 %v304
        %v625 = vunpack.c.h.b16 %v304
        %v626 = vunpack.c.l.b16 %v305
        %v627 = vunpack.c.h.b16 %v305
        %v628 = vunpack.c.l.b16 %v306
        %v629 = vunpack.c.h.b16 %v306
        %v630 = vunpack.c.l.b16 %v307
        %v631 = vunpack.c.h.b16 %v307
        %v632 = vunpack.c.l.b16 %v308
        %v633 = vunpack.c.h.b16 %v308
        %v634 = vunpack.c.l.b16 %v309
        %v635 = vunpack.c.h.b16 %v309
        %v636 = vunpack.c.l.b16 %v310
        %v637 = vunpack.c.h.b16 %v310
        %v638 = vunpack.c.l.b16 %v311
        %v639 = vunpack.c.h.b16 %v311
        %v640 = vunpack.c.l.b16 %v312
        %v641 = vunpack.c.h.b16 %v312
        %v642 = vunpack.c.l.b16 %v313
        %v643 = vunpack.c.h.b16 %v313
        %v644 = vunpack.c.l.b16 %v314
        %v645 = vunpack.c.h.b16 %v314
        %v646 = vunpack.c.l.b16 %v315
        %v647 = vunpack.c.h.b16 %v315
        %v648 = vunpack.c.l.b16 %v316
        %v649 = vunpack.c.h.b16 %v316
        %v650 = vunpack.c.l.b16 %v317
        %v651 = vunpack.c.h.b16 %v317
        %v652 = vunpack.c.l.b16 %v318
        %v653 = vunpack.c.h.b16 %v318
        %v654 = vunpack.c.l.b16 %v319
        %v655 = vunpack.c.h.b16 %v319
        %v656 = vunpack.c.l.b16 %v320
        %v657 = vunpack.c.h.b16 %v320
        %v658 = vunpack.c.l.b16 %v321
        %v659 = vunpack.c.h.b16 %v321
        %v660 = vunpack.c.l.b16 %v322
        %v661 = vunpack.c.h.b16 %v322
        %v662 = vunpack.c.l.b16 %v323
        %v663 = vunpack.c.h.b16 %v323
        %v664 = vunpack.c.l.b16 %v324
        %v665 = vunpack.c.h.b16 %v324
        %v666 = vunpack.c.l.b16 %v325
        %v667 = vunpack.c.h.b16 %v325
        %v668 = vunpack.c.l.b16 %v326
        %v669 = vunpack.c.h.b16 %v326
        %v670 = vunpack.c.l.b16 %v327
        %v671 = vunpack.c.h.b16 %v327
        %v672 = vunpack.c.l.b16 %v328
        %v673 = vunpack.c.h.b16 %v328
        %v674 = vunpack.c.l.b16 %v329
        %v675 = vunpack.c.h.b16 %v329
        %v676 = vunpack.c.l.b16 %v330
        %v677 = vunpack.c.h.b16 %v330
        %v678 = vunpack.c.l.b16 %v331
        %v679 = vunpack.c.h.b16 %v331
        %v680 = vunpack.c.l.b16 %v332
        %v681 = vunpack.c.h.b16 %v332
        %v682 = vunpack.c.l.b16 %v333
        %v683 = vunpack.c.h.b16 %v333
        %v684 = vunpack.c.l.b16 %v334
        %v685 = vunpack.c.h.b16 %v334
        %v686 = vunpack.c.l.b16 %v335
        %v687 = vunpack.c.h.b16 %v335
        %v688 = vunpack.c.l.b16 %v336
        %v689 = vunpack.c.h.b16 %v336
        %v690 = vunpack.c.l.b16 %v337
        %v691 = vunpack.c.h.b16 %v337
        %v692 = vunpack.c.l.b16 %v338
        %v693 = vunpack.c.h.b16 %v338
        %v694 = vunpack.c.l.b16 %v339
        %v695 = vunpack.c.h.b16 %v339
        %v696 = vunpack.c.l.b16 %v340
        %v697 = vunpack.c.h.b16 %v340
        %v698 = vunpack.c.l.b16 %v341
        %v699 = vunpack.c.h.b16 %v341
        %v700 = vunpack.c.l.b16 %v342
        %v701 = vunpack.c.h.b16 %v342
        %v702 = vunpack.c.l.b16 %v343
        %v703 = vunpack.c.h.b16 %v343
        %v704 = vunpack.c.l.b16 %v344
        %v705 = vunpack.c.h.b16 %v344
        %v706 = vunpack.c.l.b16 %v345
        %v707 = vunpack.c.h.b16 %v345
        %v708 = vunpack.c.l.b16 %v346
        %v709 = vunpack.c.h.b16 %v346
        %v710 = vunpack.c.l.b16 %v347
        %v711 = vunpack.c.h.b16 %v347
        %v712 = vunpack.c.l.b16 %v348
        %v713 = vunpack.c.h.b16 %v348
        %v714 = vunpack.c.l.b16 %v349
        %v715 = vunpack.c.h.b16 %v349
        %v716 = vunpack.c.l.b16 %v350
        %v717 = vunpack.c.h.b16 %v350
        %v718 = vunpack.c.l.b16 %v351
        %v719 = vunpack.c.h.b16 %v351
        %v720 = vunpack.c.l.b16 %v352
        %v721 = vunpack.c.h.b16 %v352
        %v722 = vunpack.c.l.b16 %v353
        %v723 = vunpack.c.h.b16 %v353
        %v724 = vunpack.c.l.b16 %v354
        %v725 = vunpack.c.h.b16 %v354
        %v726 = vunpack.c.l.b16 %v355
        %v727 = vunpack.c.h.b16 %v355
        %v728 = vunpack.c.l.b16 %v356
        %v729 = vunpack.c.h.b16 %v356
        %v730 = vunpack.c.l.b16 %v357
        %v731 = vunpack.c.h.b16 %v357
        %v732 = vunpack.c.l.b16 %v358
        %v733 = vunpack.c.h.b16 %v358
        %v734 = vunpack.c.l.b16 %v359
        %v735 = vunpack.c.h.b16 %v359
        %v736 = vunpack.c.l.b16 %v360
        %v737 = vunpack.c.h.b16 %v360
        %v738 = vunpack.c.l.b16 %v361
        %v739 = vunpack.c.h.b16 %v361
        %v740 = vunpack.c.l.b16 %v362
        %v741 = vunpack.c.h.b16 %v362
        %v742 = vunpack.c.l.b16 %v363
        %v743 = vunpack.c.h.b16 %v363
        %v744 = vunpack.c.l.b16 %v364
        %v745 = vunpack.c.h.b16 %v364
        %v746 = vunpack.c.l.b16 %v365
        %v747 = vunpack.c.h.b16 %v365
        %v748 = vunpack.c.l.b16 %v366
        %v749 = vunpack.c.h.b16 %v366
        %v750 = vunpack.c.l.b16 %v367
        %v751 = vunpack.c.h.b16 %v367
        %v752 = vunpack.c.l.b16 %v368
        %v753 = vunpack.c.h.b16 %v368
        %v754 = vunpack.c.l.b16 %v369
        %v755 = vunpack.c.h.b16 %v369
        %v756 = vunpack.c.l.b16 %v370
        %v757 = vunpack.c.h.b16 %v370
        %v758 = vunpack.c.l.b16 %v371
        %v759 = vunpack.c.h.b16 %v371
        %v760 = vunpack.c.l.b16 %v372
        %v761 = vunpack.c.h.b16 %v372
        %v762 = vunpack.c.l.b16 %v373
        %v763 = vunpack.c.h.b16 %v373
        %v764 = vunpack.c.l.b16 %v374
        %v765 = vunpack.c.h.b16 %v374
        %v766 = vunpack.c.l.b16 %v375
        %v767 = vunpack.c.h.b16 %v375
        %v768 = vunpack.c.l.b16 %v376
        %v769 = vunpack.c.h.b16 %v376
        %v770 = vunpack.c.l.b16 %v377
        %v771 = vunpack.c.h.b16 %v377
        %v772 = vunpack.c.l.b16 %v378
        %v773 = vunpack.c.h.b16 %v378
        %v774 = vunpack.c.l.b16 %v379
        %v775 = vunpack.c.h.b16 %v379
        %v776 = vunpack.c.l.b16 %v380
        %v777 = vunpack.c.h.b16 %v380
        %v778 = vunpack.c.l.b16 %v381
        %v779 = vunpack.c.h.b16 %v381
        %v780 = vunpack.c.l.b16 %v382
        %v781 = vunpack.c.h.b16 %v382
        %v782 = vunpack.c.l.b16 %v383
        %v783 = vunpack.c.h.b16 %v383
        %v784 = vunpack.c.l.b16 %v384
        %v785 = vunpack.c.h.b16 %v384
        %v786 = vunpack.c.l.b16 %v385
        %v787 = vunpack.c.h.b16 %v385
        %v788 = vunpack.c.l.b16 %v386
        %v789 = vunpack.c.h.b16 %v386
        %v790 = vunpack.c.l.b16 %v387
        %v791 = vunpack.c.h.b16 %v387
        %v792 = vunpack.c.l.b16 %v388
        %v793 = vunpack.c.h.b16 %v388
        %v794 = vunpack.c.l.b16 %v389
        %v795 = vunpack.c.h.b16 %v389
        %v796 = vunpack.c.l.b16 %v390
        %v797 = vunpack.c.h.b16 %v390
        %v798 = vunpack.c.l.b16 %v391
        %v799 = vunpack.c.h.b16 %v391
        %v800 = vunpack.c.l.b16 %v392
        %v801 = vunpack.c.h.b16 %v392
        %v802 = vunpack.c.l.b16 %v393
        %v803 = vunpack.c.h.b16 %v393
        %v804 = vunpack.c.l.b16 %v394
        %v805 = vunpack.c.h.b16 %v394
        %v806 = vunpack.c.l.b16 %v395
        %v807 = vunpack.c.h.b16 %v395
        %v808 = vunpack.c.l.b16 %v396
        %v809 = vunpack.c.h.b16 %v396
        %v810 = vunpack.c.l.b16 %v397
        %v811 = vunpack.c.h.b16 %v397
        %v812 = vunpack.c.l.b16 %v398
        %v813 = vunpack.c.h.b16 %v398
        %v814 = vunpack.c.l.b16 %v399
        %v815 = vunpack.c.h.b16 %v399
        %v816 = vunpack.c.l.b16 %v400
        %v817 = vunpack.c.h.b16 %v400
        %v818 = vunpack.c.l.b16 %v401
        %v819 = vunpack.c.h.b16 %v401
        %v820 = vunpack.c.l.b16 %v402
        %v821 = vunpack.c.h.b16 %v402
        %v822 = vunpack.c.l.b16 %v403
        %v823 = vunpack.c.h.b16 %v403
        %v824 = vunpack.c.l.b16 %v404
        %v825 = vunpack.c.h.b16 %v404
        %v826 = vunpack.c.l.b16 %v405
        %v827 = vunpack.c.h.b16 %v405
        %v828 = vunpack.c.l.b16 %v406
        %v829 = vunpack.c.h.b16 %v406
        %v830 = vunpack.c.l.b16 %v407
        %v831 = vunpack.c.h.b16 %v407
        %v832 = vpack.c.b16 %v584, %v576
        %v833 = vpack.c.b16 %v585, %v577
        %v834 = vpack.c.b16 %v586, %v578
        %v835 = vpack.c.b16 %v587, %v579
        %v836 = vpack.c.b16 %v588, %v580
        %v837 = vpack.c.b16 %v589, %v581
        %v838 = vpack.c.b16 %v590, %v582
        %v839 = vpack.c.b16 %v591, %v583
        %v840 = vpack.c.b16 %v600, %v592
        %v841 = vpack.c.b16 %v601, %v593
        %v842 = vpack.c.b16 %v602, %v594
        %v843 = vpack.c.b16 %v603, %v595
        %v844 = vpack.c.b16 %v604, %v596
        %v845 = vpack.c.b16 %v605, %v597
        %v846 = vpack.c.b16 %v606, %v598
        %v847 = vpack.c.b16 %v607, %v599
        %v848 = vpack.c.b16 %v616, %v608
        %v849 = vpack.c.b16 %v617, %v609
        %v850 = vpack.c.b16 %v618, %v610
        %v851 = vpack.c.b16 %v619, %v611
        %v852 = vpack.c.b16 %v620, %v612
        %v853 = vpack.c.b16 %v621, %v613
        %v854 = vpack.c.b16 %v622, %v614
        %v855 = vpack.c.b16 %v623, %v615
        %v856 = vpack.c.b16 %v632, %v624
        %v857 = vpack.c.b16 %v633, %v625
        %v858 = vpack.c.b16 %v634, %v626
        %v859 = vpack.c.b16 %v635, %v627
        %v860 = vpack.c.b16 %v636, %v628
        %v861 = vpack.c.b16 %v637, %v629
        %v862 = vpack.c.b16 %v638, %v630
        %v863 = vpack.c.b16 %v639, %v631
        %v864 = vpack.c.b16 %v648, %v640
        %v865 = vpack.c.b16 %v649, %v641
        %v866 = vpack.c.b16 %v650, %v642
        %v867 = vpack.c.b16 %v651, %v643
        %v868 = vpack.c.b16 %v652, %v644
        %v869 = vpack.c.b16 %v653, %v645
        %v870 = vpack.c.b16 %v654, %v646
        %v871 = vpack.c.b16 %v655, %v647
        %v872 = vpack.c.b16 %v664, %v656
        %v873 = vpack.c.b16 %v665, %v657
        %v874 = vpack.c.b16 %v666, %v658
        %v875 = vpack.c.b16 %v667, %v659
        %v876 = vpack.c.b16 %v668, %v660
        %v877 = vpack.c.b16 %v669, %v661
        %v878 = vpack.c.b16 %v670, %v662
        %v879 = vpack.c.b16 %v671, %v663
        %v880 = vpack.c.b16 %v680, %v672
        %v881 = vpack.c.b16 %v681, %v673
        %v882 = vpack.c.b16 %v682, %v674
        %v883 = vpack.c.b16 %v683, %v675
        %v884 = vpack.c.b16 %v684, %v676
        %v885 = vpack.c.b16 %v685, %v677
        %v886 = vpack.c.b16 %v686, %v678
        %v887 = vpack.c.b16 %v687, %v679
        %v888 = vpack.c.b16 %v696, %v688
        %v889 = vpack.c.b16 %v697, %v689
        %v890 = vpack.c.b16 %v698, %v690
        %v891 = vpack.c.b16 %v699, %v691
        %v892 = vpack.c.b16 %v700, %v692
        %v893 = vpack.c.b16 %v701, %v693
        %v894 = vpack.c.b16 %v702, %v694
        %v895 = vpack.c.b16 %v703, %v695
        %v896 = vpack.c.b16 %v712, %v704
        %v897 = vpack.c.b16 %v713, %v705
        %v898 = vpack.c.b16 %v714, %v706
        %v899 = vpack.c.b16 %v715, %v707
        %v900 = vpack.c.b16 %v716, %v708
        %v901 = vpack.c.b16 %v717, %v709
        %v902 = vpack.c.b16 %v718, %v710
        %v903 = vpack.c.b16 %v719, %v711
        %v904 = vpack.c.b16 %v728, %v720
        %v905 = vpack.c.b16 %v729, %v721
        %v906 = vpack.c.b16 %v730, %v722
        %v907 = vpack.c.b16 %v731, %v723
        %v908 = vpack.c.b16 %v732, %v724
        %v909 = vpack.c.b16 %v733, %v725
        %v910 = vpack.c.b16 %v734, %v726
        %v911 = vpack.c.b16 %v735, %v727
        %v912 = vpack.c.b16 %v744, %v736
        %v913 = vpack.c.b16 %v745, %v737
        %v914 = vpack.c.b16 %v746, %v738
        %v915 = vpack.c.b16 %v747, %v739
        %v916 = vpack.c.b16 %v748, %v740
        %v917 = vpack.c.b16 %v749, %v741
        %v918 = vpack.c.b16 %v750, %v742
        %v919 = vpack.c.b16 %v751, %v743
        %v920 = vpack.c.b16 %v760, %v752
        %v921 = vpack.c.b16 %v761, %v753
        %v922 = vpack.c.b16 %v762, %v754
        %v923 = vpack.c.b16 %v763, %v755
        %v924 = vpack.c.b16 %v764, %v756
        %v925 = vpack.c.b16 %v765, %v757
        %v926 = vpack.c.b16 %v766, %v758
        %v927 = vpack.c.b16 %v767, %v759
        %v928 = vpack.c.b16 %v776, %v768
        %v929 = vpack.c.b16 %v777, %v769
        %v930 = vpack.c.b16 %v778, %v770
        %v931 = vpack.c.b16 %v779, %v771
        %v932 = vpack.c.b16 %v780, %v772
        %v933 = vpack.c.b16 %v781, %v773
        %v934 = vpack.c.b16 %v782, %v774
        %v935 = vpack.c.b16 %v783, %v775
        %v936 = vpack.c.b16 %v792, %v784
        %v937 = vpack.c.b16 %v793, %v785
        %v938 = vpack.c.b16 %v794, %v786
        %v939 = vpack.c.b16 %v795, %v787
        %v940 = vpack.c.b16 %v796, %v788
        %v941 = vpack.c.b16 %v797, %v789
        %v942 = vpack.c.b16 %v798, %v790
        %v943 = vpack.c.b16 %v799, %v791
        %v944 = vpack.c.b16 %v808, %v800
        %v945 = vpack.c.b16 %v809, %v801
        %v946 = vpack.c.b16 %v810, %v802
        %v947 = vpack.c.b16 %v811, %v803
        %v948 = vpack.c.b16 %v812, %v804
        %v949 = vpack.c.b16 %v813, %v805
        %v950 = vpack.c.b16 %v814, %v806
        %v951 = vpack.c.b16 %v815, %v807
        %v952 = vpack.c.b16 %v824, %v816
        %v953 = vpack.c.b16 %v825, %v817
        %v954 = vpack.c.b16 %v826, %v818
        %v955 = vpack.c.b16 %v827, %v819
        %v956 = vpack.c.b16 %v828, %v820
        %v957 = vpack.c.b16 %v829, %v821
        %v958 = vpack.c.b16 %v830, %v822
        %v959 = vpack.c.b16 %v831, %v823
        %1088 = vmatprep.subr.bf16.mxu0 %v889
        %1089 = vmatpush1.bf16.msra.mxu0 %v888
        %1090 = vmatprep.subr.bf16.mxu0 %v881
        %1091 = vmatpush1.bf16.msra.mxu0 %v880
        %1092 = vmatprep.subr.bf16.mxu0 %v873
        %1093 = vmatpush1.bf16.msra.mxu0 %v872
        %1094 = vmatprep.subr.bf16.mxu0 %v865
        %1095 = vmatpush1.bf16.msra.mxu0 %v864
        %1096 = vmatprep.subr.bf16.mxu0 %v857
        %1097 = vmatpush1.bf16.msra.mxu0 %v856
        %1098 = vmatprep.subr.bf16.mxu0 %v849
        %1099 = vmatpush1.bf16.msra.mxu0 %v848
        %1100 = vmatprep.subr.bf16.mxu0 %v841
        %1101 = vmatpush1.bf16.msra.mxu0 %v840
        %1102 = vmatprep.subr.bf16.mxu0 %v833
        %1103 = vmatpush1.bf16.msra.mxu0 %v832
        %1104 = vmatprep.subr.bf16.mxu0 %v953
        %1105 = vmatpush2.bf16.msra.mxu0 %v952
        %1106 = vmatprep.subr.bf16.mxu0 %v945
        %1107 = vmatpush2.bf16.msra.mxu0 %v944
        %1108 = vmatprep.subr.bf16.mxu0 %v937
        %1109 = vmatpush2.bf16.msra.mxu0 %v936
        %1110 = vmatprep.subr.bf16.mxu0 %v929
        %1111 = vmatpush2.bf16.msra.mxu0 %v928
        %1112 = vmatprep.subr.bf16.mxu0 %v921
        %1113 = vmatpush2.bf16.msra.mxu0 %v920
        %1114 = vmatprep.subr.bf16.mxu0 %v913
        %1115 = vmatpush2.bf16.msra.mxu0 %v912
        %1116 = vmatprep.subr.bf16.mxu0 %v905
        %1117 = vmatpush2.bf16.msra.mxu0 %v904
        %1118 = vmatprep.subr.bf16.mxu0 %v897
        %1119 = vmatpush2.bf16.msra.mxu0 %v896
        %1120 = vmatprep.mubr.bf16.mxu0 %v433
        %1121 = vmatmul.mubr.bf16.gmra.mxu0 %v432
        %v1122 = vpop.f32.mrf.mxu0
        %v1123 = vadd.f32 0.0, %v1122
        %v1124 = vpop.f32.mrf.mxu0
        %v1125 = vadd.f32 0.0, %v1124
        %v1126 = vpop.f32.mrf.mxu0
        %v1127 = vadd.f32 0.0, %v1126
        %v1128 = vpop.f32.mrf.mxu0
        %v1129 = vadd.f32 0.0, %v1128
        %1130 = vmatprep.mubr.bf16.mxu0 %v435
        %1131 = vmatmul.mubr.bf16.gmra.mxu0 %v434
        %v1132 = vpop.f32.mrf.mxu0
        %v1133 = vadd.f32 0.0, %v1132
        %v1134 = vpop.f32.mrf.mxu0
        %v1135 = vadd.f32 0.0, %v1134
        %v1136 = vpop.f32.mrf.mxu0
        %v1137 = vadd.f32 0.0, %v1136
        %v1138 = vpop.f32.mrf.mxu0
        %v1139 = vadd.f32 0.0, %v1138
        %1140 = vmatprep.mubr.bf16.mxu0 %v437
        %1141 = vmatmul.mubr.bf16.gmra.mxu0 %v436
        %v1142 = vpop.f32.mrf.mxu0
        %v1143 = vadd.f32 0.0, %v1142
        %v1144 = vpop.f32.mrf.mxu0
        %v1145 = vadd.f32 0.0, %v1144
        %v1146 = vpop.f32.mrf.mxu0
        %v1147 = vadd.f32 0.0, %v1146
        %v1148 = vpop.f32.mrf.mxu0
        %v1149 = vadd.f32 0.0, %v1148
        %1150 = vmatprep.mubr.bf16.mxu0 %v439
        %1151 = vmatmul.mubr.bf16.gmra.mxu0 %v438
        %v1152 = vpop.f32.mrf.mxu0
        %v1153 = vadd.f32 0.0, %v1152
        %v1154 = vpop.f32.mrf.mxu0
        %v1155 = vadd.f32 0.0, %v1154
        %v1156 = vpop.f32.mrf.mxu0
        %v1157 = vadd.f32 0.0, %v1156
        %v1158 = vpop.f32.mrf.mxu0
        %v1159 = vadd.f32 0.0, %v1158
        %1160 = vdwg.mxu0
        %1161 = vmatprep.subr.bf16.mxu0 %v891
        %1162 = vmatpush1.bf16.msra.mxu0 %v890
        %1163 = vmatprep.subr.bf16.mxu0 %v883
        %1164 = vmatpush1.bf16.msra.mxu0 %v882
        %1165 = vmatprep.subr.bf16.mxu0 %v875
        %1166 = vmatpush1.bf16.msra.mxu0 %v874
        %1167 = vmatprep.subr.bf16.mxu0 %v867
        %1168 = vmatpush1.bf16.msra.mxu0 %v866
        %1169 = vmatprep.subr.bf16.mxu0 %v859
        %1170 = vmatpush1.bf16.msra.mxu0 %v858
        %1171 = vmatprep.subr.bf16.mxu0 %v851
        %1172 = vmatpush1.bf16.msra.mxu0 %v850
        %1173 = vmatprep.subr.bf16.mxu0 %v843
        %1174 = vmatpush1.bf16.msra.mxu0 %v842
        %1175 = vmatprep.subr.bf16.mxu0 %v835
        %1176 = vmatpush1.bf16.msra.mxu0 %v834
        %1177 = vmatprep.subr.bf16.mxu0 %v955
        %1178 = vmatpush2.bf16.msra.mxu0 %v954
        %1179 = vmatprep.subr.bf16.mxu0 %v947
        %1180 = vmatpush2.bf16.msra.mxu0 %v946
        %1181 = vmatprep.subr.bf16.mxu0 %v939
        %1182 = vmatpush2.bf16.msra.mxu0 %v938
        %1183 = vmatprep.subr.bf16.mxu0 %v931
        %1184 = vmatpush2.bf16.msra.mxu0 %v930
        %1185 = vmatprep.subr.bf16.mxu0 %v923
        %1186 = vmatpush2.bf16.msra.mxu0 %v922
        %1187 = vmatprep.subr.bf16.mxu0 %v915
        %1188 = vmatpush2.bf16.msra.mxu0 %v914
        %1189 = vmatprep.subr.bf16.mxu0 %v907
        %1190 = vmatpush2.bf16.msra.mxu0 %v906
        %1191 = vmatprep.subr.bf16.mxu0 %v899
        %1192 = vmatpush2.bf16.msra.mxu0 %v898
        %1193 = vmatprep.mubr.bf16.mxu0 %v433
        %1194 = vmatmul.mubr.bf16.gmra.mxu0 %v432
        %v1195 = vpop.f32.mrf.mxu0
        %v1196 = vadd.f32 0.0, %v1195
        %v1197 = vpop.f32.mrf.mxu0
        %v1198 = vadd.f32 0.0, %v1197
        %v1199 = vpop.f32.mrf.mxu0
        %v1200 = vadd.f32 0.0, %v1199
        %v1201 = vpop.f32.mrf.mxu0
        %v1202 = vadd.f32 0.0, %v1201
        %1203 = vmatprep.mubr.bf16.mxu0 %v435
        %1204 = vmatmul.mubr.bf16.gmra.mxu0 %v434
        %v1205 = vpop.f32.mrf.mxu0
        %v1206 = vadd.f32 0.0, %v1205
        %v1207 = vpop.f32.mrf.mxu0
        %v1208 = vadd.f32 0.0, %v1207
        %v1209 = vpop.f32.mrf.mxu0
        %v1210 = vadd.f32 0.0, %v1209
        %v1211 = vpop.f32.mrf.mxu0
        %v1212 = vadd.f32 0.0, %v1211
        %1213 = vmatprep.mubr.bf16.mxu0 %v437
        %1214 = vmatmul.mubr.bf16.gmra.mxu0 %v436
        %v1215 = vpop.f32.mrf.mxu0
        %v1216 = vadd.f32 0.0, %v1215
        %v1217 = vpop.f32.mrf.mxu0
        %v1218 = vadd.f32 0.0, %v1217
        %v1219 = vpop.f32.mrf.mxu0
        %v1220 = vadd.f32 0.0, %v1219
        %v1221 = vpop.f32.mrf.mxu0
        %v1222 = vadd.f32 0.0, %v1221
        %1223 = vmatprep.mubr.bf16.mxu0 %v439
        %1224 = vmatmul.mubr.bf16.gmra.mxu0 %v438
        %v1225 = vpop.f32.mrf.mxu0
        %v1226 = vadd.f32 0.0, %v1225
        %v1227 = vpop.f32.mrf.mxu0
        %v1228 = vadd.f32 0.0, %v1227
        %v1229 = vpop.f32.mrf.mxu0
        %v1230 = vadd.f32 0.0, %v1229
        %v1231 = vpop.f32.mrf.mxu0
        %v1232 = vadd.f32 0.0, %v1231
        %1233 = vdwg.mxu0
        %1234 = vmatprep.subr.bf16.mxu0 %v893
        %1235 = vmatpush1.bf16.msra.mxu0 %v892
        %1236 = vmatprep.subr.bf16.mxu0 %v885
        %1237 = vmatpush1.bf16.msra.mxu0 %v884
        %1238 = vmatprep.subr.bf16.mxu0 %v877
        %1239 = vmatpush1.bf16.msra.mxu0 %v876
        %1240 = vmatprep.subr.bf16.mxu0 %v869
        %1241 = vmatpush1.bf16.msra.mxu0 %v868
        %1242 = vmatprep.subr.bf16.mxu0 %v861
        %1243 = vmatpush1.bf16.msra.mxu0 %v860
        %1244 = vmatprep.subr.bf16.mxu0 %v853
        %1245 = vmatpush1.bf16.msra.mxu0 %v852
        %1246 = vmatprep.subr.bf16.mxu0 %v845
        %1247 = vmatpush1.bf16.msra.mxu0 %v844
        %1248 = vmatprep.subr.bf16.mxu0 %v837
        %1249 = vmatpush1.bf16.msra.mxu0 %v836
        %1250 = vmatprep.subr.bf16.mxu0 %v957
        %1251 = vmatpush2.bf16.msra.mxu0 %v956
        %1252 = vmatprep.subr.bf16.mxu0 %v949
        %1253 = vmatpush2.bf16.msra.mxu0 %v948
        %1254 = vmatprep.subr.bf16.mxu0 %v941
        %1255 = vmatpush2.bf16.msra.mxu0 %v940
        %1256 = vmatprep.subr.bf16.mxu0 %v933
        %1257 = vmatpush2.bf16.msra.mxu0 %v932
        %1258 = vmatprep.subr.bf16.mxu0 %v925
        %1259 = vmatpush2.bf16.msra.mxu0 %v924
        %1260 = vmatprep.subr.bf16.mxu0 %v917
        %1261 = vmatpush2.bf16.msra.mxu0 %v916
        %1262 = vmatprep.subr.bf16.mxu0 %v909
        %1263 = vmatpush2.bf16.msra.mxu0 %v908
        %1264 = vmatprep.subr.bf16.mxu0 %v901
        %1265 = vmatpush2.bf16.msra.mxu0 %v900
        %1266 = vmatprep.mubr.bf16.mxu0 %v433
        %1267 = vmatmul.mubr.bf16.gmra.mxu0 %v432
        %v1268 = vpop.f32.mrf.mxu0
        %v1269 = vadd.f32 0.0, %v1268
        %v1270 = vpop.f32.mrf.mxu0
        %v1271 = vadd.f32 0.0, %v1270
        %v1272 = vpop.f32.mrf.mxu0
        %v1273 = vadd.f32 0.0, %v1272
        %v1274 = vpop.f32.mrf.mxu0
        %v1275 = vadd.f32 0.0, %v1274
        %1276 = vmatprep.mubr.bf16.mxu0 %v435
        %1277 = vmatmul.mubr.bf16.gmra.mxu0 %v434
        %v1278 = vpop.f32.mrf.mxu0
        %v1279 = vadd.f32 0.0, %v1278
        %v1280 = vpop.f32.mrf.mxu0
        %v1281 = vadd.f32 0.0, %v1280
        %v1282 = vpop.f32.mrf.mxu0
        %v1283 = vadd.f32 0.0, %v1282
        %v1284 = vpop.f32.mrf.mxu0
        %v1285 = vadd.f32 0.0, %v1284
        %1286 = vmatprep.mubr.bf16.mxu0 %v437
        %1287 = vmatmul.mubr.bf16.gmra.mxu0 %v436
        %v1288 = vpop.f32.mrf.mxu0
        %v1289 = vadd.f32 0.0, %v1288
        %v1290 = vpop.f32.mrf.mxu0
        %v1291 = vadd.f32 0.0, %v1290
        %v1292 = vpop.f32.mrf.mxu0
        %v1293 = vadd.f32 0.0, %v1292
        %v1294 = vpop.f32.mrf.mxu0
        %v1295 = vadd.f32 0.0, %v1294
        %1296 = vmatprep.mubr.bf16.mxu0 %v439
        %1297 = vmatmul.mubr.bf16.gmra.mxu0 %v438
        %v1298 = vpop.f32.mrf.mxu0
        %v1299 = vadd.f32 0.0, %v1298
        %v1300 = vpop.f32.mrf.mxu0
        %v1301 = vadd.f32 0.0, %v1300
        %v1302 = vpop.f32.mrf.mxu0
        %v1303 = vadd.f32 0.0, %v1302
        %v1304 = vpop.f32.mrf.mxu0
        %v1305 = vadd.f32 0.0, %v1304
        %1306 = vdwg.mxu0
        %1307 = vmatprep.subr.bf16.mxu0 %v895
        %1308 = vmatpush1.bf16.msra.mxu0 %v894
        %1309 = vmatprep.subr.bf16.mxu0 %v887
        %1310 = vmatpush1.bf16.msra.mxu0 %v886
        %1311 = vmatprep.subr.bf16.mxu0 %v879
        %1312 = vmatpush1.bf16.msra.mxu0 %v878
        %1313 = vmatprep.subr.bf16.mxu0 %v871
        %1314 = vmatpush1.bf16.msra.mxu0 %v870
        %1315 = vmatprep.subr.bf16.mxu0 %v863
        %1316 = vmatpush1.bf16.msra.mxu0 %v862
        %1317 = vmatprep.subr.bf16.mxu0 %v855
        %1318 = vmatpush1.bf16.msra.mxu0 %v854
        %1319 = vmatprep.subr.bf16.mxu0 %v847
        %1320 = vmatpush1.bf16.msra.mxu0 %v846
        %1321 = vmatprep.subr.bf16.mxu0 %v839
        %1322 = vmatpush1.bf16.msra.mxu0 %v838
        %1323 = vmatprep.subr.bf16.mxu0 %v959
        %1324 = vmatpush2.bf16.msra.mxu0 %v958
        %1325 = vmatprep.subr.bf16.mxu0 %v951
        %1326 = vmatpush2.bf16.msra.mxu0 %v950
        %1327 = vmatprep.subr.bf16.mxu0 %v943
        %1328 = vmatpush2.bf16.msra.mxu0 %v942
        %1329 = vmatprep.subr.bf16.mxu0 %v935
        %1330 = vmatpush2.bf16.msra.mxu0 %v934
        %1331 = vmatprep.subr.bf16.mxu0 %v927
        %1332 = vmatpush2.bf16.msra.mxu0 %v926
        %1333 = vmatprep.subr.bf16.mxu0 %v919
        %1334 = vmatpush2.bf16.msra.mxu0 %v918
        %1335 = vmatprep.subr.bf16.mxu0 %v911
        %1336 = vmatpush2.bf16.msra.mxu0 %v910
        %1337 = vmatprep.subr.bf16.mxu0 %v903
        %1338 = vmatpush2.bf16.msra.mxu0 %v902
        %1339 = vmatprep.mubr.bf16.mxu0 %v433
        %1340 = vmatmul.mubr.bf16.gmra.mxu0 %v432
        %v1341 = vpop.f32.mrf.mxu0
        %v1342 = vadd.f32 0.0, %v1341
        %v1343 = vpop.f32.mrf.mxu0
        %v1344 = vadd.f32 0.0, %v1343
        %v1345 = vpop.f32.mrf.mxu0
        %v1346 = vadd.f32 0.0, %v1345
        %v1347 = vpop.f32.mrf.mxu0
        %v1348 = vadd.f32 0.0, %v1347
        %1349 = vmatprep.mubr.bf16.mxu0 %v435
        %1350 = vmatmul.mubr.bf16.gmra.mxu0 %v434
        %v1351 = vpop.f32.mrf.mxu0
        %v1352 = vadd.f32 0.0, %v1351
        %v1353 = vpop.f32.mrf.mxu0
        %v1354 = vadd.f32 0.0, %v1353
        %v1355 = vpop.f32.mrf.mxu0
        %v1356 = vadd.f32 0.0, %v1355
        %v1357 = vpop.f32.mrf.mxu0
        %v1358 = vadd.f32 0.0, %v1357
        %1359 = vmatprep.mubr.bf16.mxu0 %v437
        %1360 = vmatmul.mubr.bf16.gmra.mxu0 %v436
        %v1361 = vpop.f32.mrf.mxu0
        %v1362 = vadd.f32 0.0, %v1361
        %v1363 = vpop.f32.mrf.mxu0
        %v1364 = vadd.f32 0.0, %v1363
        %v1365 = vpop.f32.mrf.mxu0
        %v1366 = vadd.f32 0.0, %v1365
        %v1367 = vpop.f32.mrf.mxu0
        %v1368 = vadd.f32 0.0, %v1367
        %1369 = vmatprep.mubr.bf16.mxu0 %v439
        %1370 = vmatmul.mubr.bf16.gmra.mxu0 %v438
        %v1371 = vpop.f32.mrf.mxu0
        %v1372 = vadd.f32 0.0, %v1371
        %v1373 = vpop.f32.mrf.mxu0
        %v1374 = vadd.f32 0.0, %v1373
        %v1375 = vpop.f32.mrf.mxu0
        %v1376 = vadd.f32 0.0, %v1375
        %v1377 = vpop.f32.mrf.mxu0
        %v1378 = vadd.f32 0.0, %v1377
        %1379 = vdwg.mxu0
        %v1380 = vxor.u32 %v1123, 2147483648
        %v1381 = vxor.u32 %v1125, 2147483648
        %v1382 = vxor.u32 %v1196, 2147483648
        %v1383 = vxor.u32 %v1198, 2147483648
        %v1384 = vxor.u32 %v1127, 2147483648
        %v1385 = vxor.u32 %v1129, 2147483648
        %v1386 = vxor.u32 %v1200, 2147483648
        %v1387 = vxor.u32 %v1202, 2147483648
        %v1388 = vxor.u32 %v1133, 2147483648
        %v1389 = vxor.u32 %v1135, 2147483648
        %v1390 = vxor.u32 %v1206, 2147483648
        %v1391 = vxor.u32 %v1208, 2147483648
        %v1392 = vxor.u32 %v1137, 2147483648
        %v1393 = vxor.u32 %v1139, 2147483648
        %v1394 = vxor.u32 %v1210, 2147483648
        %v1395 = vxor.u32 %v1212, 2147483648
        %v1396 = vxor.u32 %v1143, 2147483648
        %v1397 = vxor.u32 %v1145, 2147483648
        %v1398 = vxor.u32 %v1216, 2147483648
        %v1399 = vxor.u32 %v1218, 2147483648
        %v1400 = vxor.u32 %v1147, 2147483648
        %v1401 = vxor.u32 %v1149, 2147483648
        %v1402 = vxor.u32 %v1220, 2147483648
        %v1403 = vxor.u32 %v1222, 2147483648
        %v1404 = vxor.u32 %v1153, 2147483648
        %v1405 = vxor.u32 %v1155, 2147483648
        %v1406 = vxor.u32 %v1226, 2147483648
        %v1407 = vxor.u32 %v1228, 2147483648
        %v1408 = vxor.u32 %v1157, 2147483648
        %v1409 = vxor.u32 %v1159, 2147483648
        %v1410 = vxor.u32 %v1230, 2147483648
        %v1411 = vxor.u32 %v1232, 2147483648
        %v1412 = vmul.f32 %v1380, 1.442695
        %v1413 = vpow.pop %v1412
        %v1414 = vmul.f32 %v1381, 1.442695
        %v1415 = vpow.pop %v1414
        %v1416 = vmul.f32 %v1382, 1.442695
        %v1417 = vpow.pop %v1416
        %v1418 = vmul.f32 %v1383, 1.442695
        %v1419 = vpow.pop %v1418
        %v1420 = vmul.f32 %v1384, 1.442695
        %v1421 = vpow.pop %v1420
        %v1422 = vmul.f32 %v1385, 1.442695
        %v1423 = vpow.pop %v1422
        %v1424 = vmul.f32 %v1386, 1.442695
        %v1425 = vpow.pop %v1424
        %v1426 = vmul.f32 %v1387, 1.442695
        %v1427 = vpow.pop %v1426
        %v1428 = vmul.f32 %v1388, 1.442695
        %v1429 = vpow.pop %v1428
        %v1430 = vmul.f32 %v1389, 1.442695
        %v1431 = vpow.pop %v1430
        %v1432 = vmul.f32 %v1390, 1.442695
        %v1433 = vpow.pop %v1432
        %v1434 = vmul.f32 %v1391, 1.442695
        %v1435 = vpow.pop %v1434
        %v1436 = vmul.f32 %v1392, 1.442695
        %v1437 = vpow.pop %v1436
        %v1438 = vmul.f32 %v1393, 1.442695
        %v1439 = vpow.pop %v1438
        %v1440 = vmul.f32 %v1394, 1.442695
        %v1441 = vpow.pop %v1440
        %v1442 = vmul.f32 %v1395, 1.442695
        %v1443 = vpow.pop %v1442
        %v1444 = vmul.f32 %v1396, 1.442695
        %v1445 = vpow.pop %v1444
        %v1446 = vmul.f32 %v1397, 1.442695
        %v1447 = vpow.pop %v1446
        %v1448 = vmul.f32 %v1398, 1.442695
        %v1449 = vpow.pop %v1448
        %v1450 = vmul.f32 %v1399, 1.442695
        %v1451 = vpow.pop %v1450
        %v1452 = vmul.f32 %v1400, 1.442695
        %v1453 = vpow.pop %v1452
        %v1454 = vmul.f32 %v1401, 1.442695
        %v1455 = vpow.pop %v1454
        %v1456 = vmul.f32 %v1402, 1.442695
        %v1457 = vpow.pop %v1456
        %v1458 = vmul.f32 %v1403, 1.442695
        %v1459 = vpow.pop %v1458
        %v1460 = vmul.f32 %v1404, 1.442695
        %v1461 = vpow.pop %v1460
        %v1462 = vmul.f32 %v1405, 1.442695
        %v1463 = vpow.pop %v1462
        %v1464 = vmul.f32 %v1406, 1.442695
        %v1465 = vpow.pop %v1464
        %v1466 = vmul.f32 %v1407, 1.442695
        %v1467 = vpow.pop %v1466
        %v1468 = vmul.f32 %v1408, 1.442695
        %v1469 = vpow.pop %v1468
        %v1470 = vmul.f32 %v1409, 1.442695
        %v1471 = vpow.pop %v1470
        %v1472 = vmul.f32 %v1410, 1.442695
        %v1473 = vpow.pop %v1472
        %v1474 = vmul.f32 %v1411, 1.442695
        %v1475 = vpow.pop %v1474
        %v1476 = vadd.f32 %v1413, 1.0
        %v1477 = vadd.f32 %v1415, 1.0
        %v1478 = vadd.f32 %v1417, 1.0
        %v1479 = vadd.f32 %v1419, 1.0
        %v1480 = vadd.f32 %v1421, 1.0
        %v1481 = vadd.f32 %v1423, 1.0
        %v1482 = vadd.f32 %v1425, 1.0
        %v1483 = vadd.f32 %v1427, 1.0
        %v1484 = vadd.f32 %v1429, 1.0
        %v1485 = vadd.f32 %v1431, 1.0
        %v1486 = vadd.f32 %v1433, 1.0
        %v1487 = vadd.f32 %v1435, 1.0
        %v1488 = vadd.f32 %v1437, 1.0
        %v1489 = vadd.f32 %v1439, 1.0
        %v1490 = vadd.f32 %v1441, 1.0
        %v1491 = vadd.f32 %v1443, 1.0
        %v1492 = vadd.f32 %v1445, 1.0
        %v1493 = vadd.f32 %v1447, 1.0
        %v1494 = vadd.f32 %v1449, 1.0
        %v1495 = vadd.f32 %v1451, 1.0
        %v1496 = vadd.f32 %v1453, 1.0
        %v1497 = vadd.f32 %v1455, 1.0
        %v1498 = vadd.f32 %v1457, 1.0
        %v1499 = vadd.f32 %v1459, 1.0
        %v1500 = vadd.f32 %v1461, 1.0
        %v1501 = vadd.f32 %v1463, 1.0
        %v1502 = vadd.f32 %v1465, 1.0
        %v1503 = vadd.f32 %v1467, 1.0
        %v1504 = vadd.f32 %v1469, 1.0
        %v1505 = vadd.f32 %v1471, 1.0
        %v1506 = vadd.f32 %v1473, 1.0
        %v1507 = vadd.f32 %v1475, 1.0
        %v1508 = vrcp.pop %v1476
        %v1509 = vmul.f32 1.0, %v1508
        %v1510 = vrcp.pop %v1477
        %v1511 = vmul.f32 1.0, %v1510
        %v1512 = vrcp.pop %v1478
        %v1513 = vmul.f32 1.0, %v1512
        %v1514 = vrcp.pop %v1479
        %v1515 = vmul.f32 1.0, %v1514
        %v1516 = vrcp.pop %v1480
        %v1517 = vmul.f32 1.0, %v1516
        %v1518 = vrcp.pop %v1481
        %v1519 = vmul.f32 1.0, %v1518
        %v1520 = vrcp.pop %v1482
        %v1521 = vmul.f32 1.0, %v1520
        %v1522 = vrcp.pop %v1483
        %v1523 = vmul.f32 1.0, %v1522
        %v1524 = vrcp.pop %v1484
        %v1525 = vmul.f32 1.0, %v1524
        %v1526 = vrcp.pop %v1485
        %v1527 = vmul.f32 1.0, %v1526
        %v1528 = vrcp.pop %v1486
        %v1529 = vmul.f32 1.0, %v1528
        %v1530 = vrcp.pop %v1487
        %v1531 = vmul.f32 1.0, %v1530
        %v1532 = vrcp.pop %v1488
        %v1533 = vmul.f32 1.0, %v1532
        %v1534 = vrcp.pop %v1489
        %v1535 = vmul.f32 1.0, %v1534
        %v1536 = vrcp.pop %v1490
        %v1537 = vmul.f32 1.0, %v1536
        %v1538 = vrcp.pop %v1491
        %v1539 = vmul.f32 1.0, %v1538
        %v1540 = vrcp.pop %v1492
        %v1541 = vmul.f32 1.0, %v1540
        %v1542 = vrcp.pop %v1493
        %v1543 = vmul.f32 1.0, %v1542
        %v1544 = vrcp.pop %v1494
        %v1545 = vmul.f32 1.0, %v1544
        %v1546 = vrcp.pop %v1495
        %v1547 = vmul.f32 1.0, %v1546
        %v1548 = vrcp.pop %v1496
        %v1549 = vmul.f32 1.0, %v1548
        %v1550 = vrcp.pop %v1497
        %v1551 = vmul.f32 1.0, %v1550
        %v1552 = vrcp.pop %v1498
        %v1553 = vmul.f32 1.0, %v1552
        %v1554 = vrcp.pop %v1499
        %v1555 = vmul.f32 1.0, %v1554
        %v1556 = vrcp.pop %v1500
        %v1557 = vmul.f32 1.0, %v1556
        %v1558 = vrcp.pop %v1501
        %v1559 = vmul.f32 1.0, %v1558
        %v1560 = vrcp.pop %v1502
        %v1561 = vmul.f32 1.0, %v1560
        %v1562 = vrcp.pop %v1503
        %v1563 = vmul.f32 1.0, %v1562
        %v1564 = vrcp.pop %v1504
        %v1565 = vmul.f32 1.0, %v1564
        %v1566 = vrcp.pop %v1505
        %v1567 = vmul.f32 1.0, %v1566
        %v1568 = vrcp.pop %v1506
        %v1569 = vmul.f32 1.0, %v1568
        %v1570 = vrcp.pop %v1507
        %v1571 = vmul.f32 1.0, %v1570
        %v1572 = vmul.f32 %v1123, %v1509
        %v1573 = vmul.f32 %v1125, %v1511
        %v1574 = vmul.f32 %v1196, %v1513
        %v1575 = vmul.f32 %v1198, %v1515
        %v1576 = vmul.f32 %v1127, %v1517
        %v1577 = vmul.f32 %v1129, %v1519
        %v1578 = vmul.f32 %v1200, %v1521
        %v1579 = vmul.f32 %v1202, %v1523
        %v1580 = vmul.f32 %v1133, %v1525
        %v1581 = vmul.f32 %v1135, %v1527
        %v1582 = vmul.f32 %v1206, %v1529
        %v1583 = vmul.f32 %v1208, %v1531
        %v1584 = vmul.f32 %v1137, %v1533
        %v1585 = vmul.f32 %v1139, %v1535
        %v1586 = vmul.f32 %v1210, %v1537
        %v1587 = vmul.f32 %v1212, %v1539
        %v1588 = vmul.f32 %v1143, %v1541
        %v1589 = vmul.f32 %v1145, %v1543
        %v1590 = vmul.f32 %v1216, %v1545
        %v1591 = vmul.f32 %v1218, %v1547
        %v1592 = vmul.f32 %v1147, %v1549
        %v1593 = vmul.f32 %v1149, %v1551
        %v1594 = vmul.f32 %v1220, %v1553
        %v1595 = vmul.f32 %v1222, %v1555
        %v1596 = vmul.f32 %v1153, %v1557
        %v1597 = vmul.f32 %v1155, %v1559
        %v1598 = vmul.f32 %v1226, %v1561
        %v1599 = vmul.f32 %v1228, %v1563
        %v1600 = vmul.f32 %v1157, %v1565
        %v1601 = vmul.f32 %v1159, %v1567
        %v1602 = vmul.f32 %v1230, %v1569
        %v1603 = vmul.f32 %v1232, %v1571
        %v1604 = vmul.f32 %v1572, %v1269
        %v1605 = vmul.f32 %v1573, %v1271
        %v1606 = vmul.f32 %v1574, %v1342
        %v1607 = vmul.f32 %v1575, %v1344
        %v1608 = vmul.f32 %v1576, %v1273
        %v1609 = vmul.f32 %v1577, %v1275
        %v1610 = vmul.f32 %v1578, %v1346
        %v1611 = vmul.f32 %v1579, %v1348
        %v1612 = vmul.f32 %v1580, %v1279
        %v1613 = vmul.f32 %v1581, %v1281
        %v1614 = vmul.f32 %v1582, %v1352
        %v1615 = vmul.f32 %v1583, %v1354
        %v1616 = vmul.f32 %v1584, %v1283
        %v1617 = vmul.f32 %v1585, %v1285
        %v1618 = vmul.f32 %v1586, %v1356
        %v1619 = vmul.f32 %v1587, %v1358
        %v1620 = vmul.f32 %v1588, %v1289
        %v1621 = vmul.f32 %v1589, %v1291
        %v1622 = vmul.f32 %v1590, %v1362
        %v1623 = vmul.f32 %v1591, %v1364
        %v1624 = vmul.f32 %v1592, %v1293
        %v1625 = vmul.f32 %v1593, %v1295
        %v1626 = vmul.f32 %v1594, %v1366
        %v1627 = vmul.f32 %v1595, %v1368
        %v1628 = vmul.f32 %v1596, %v1299
        %v1629 = vmul.f32 %v1597, %v1301
        %v1630 = vmul.f32 %v1598, %v1372
        %v1631 = vmul.f32 %v1599, %v1374
        %v1632 = vmul.f32 %v1600, %v1303
        %v1633 = vmul.f32 %v1601, %v1305
        %v1634 = vmul.f32 %v1602, %v1376
        %v1635 = vmul.f32 %v1603, %v1378
        %v1636 = vpack.c.bf16 %v1608, %v1604
        %v1637 = vpack.c.bf16 %v1609, %v1605
        %v1638 = vpack.c.bf16 %v1610, %v1606
        %v1639 = vpack.c.bf16 %v1611, %v1607
        %v1640 = vpack.c.bf16 %v1616, %v1612
        %v1641 = vpack.c.bf16 %v1617, %v1613
        %v1642 = vpack.c.bf16 %v1618, %v1614
        %v1643 = vpack.c.bf16 %v1619, %v1615
        %v1644 = vpack.c.bf16 %v1624, %v1620
        %v1645 = vpack.c.bf16 %v1625, %v1621
        %v1646 = vpack.c.bf16 %v1626, %v1622
        %v1647 = vpack.c.bf16 %v1627, %v1623
        %v1648 = vpack.c.bf16 %v1632, %v1628
        %v1649 = vpack.c.bf16 %v1633, %v1629
        %v1650 = vpack.c.bf16 %v1634, %v1630
        %v1651 = vpack.c.bf16 %v1635, %v1631
        %v1652 = vld [vmem:[#allocation2] sm:$0xff]
        %v1653 = vld [vmem:[#allocation2 + $0x8] sm:$0xff]
        %v1654 = vld [vmem:[#allocation2 + $0x10] sm:$0xff]
        %v1655 = vld [vmem:[#allocation2 + $0x18] sm:$0xff]
        %v1656 = vld [vmem:[#allocation2 + $0x20] sm:$0xff]
        %v1657 = vld [vmem:[#allocation2 + $0x28] sm:$0xff]
        %v1658 = vld [vmem:[#allocation2 + $0x30] sm:$0xff]
        %v1659 = vld [vmem:[#allocation2 + $0x38] sm:$0xff]
        %v1660 = vld [vmem:[#allocation2 + $0x40] sm:$0xff]
        %v1661 = vld [vmem:[#allocation2 + $0x48] sm:$0xff]
        %v1662 = vld [vmem:[#allocation2 + $0x50] sm:$0xff]
        %v1663 = vld [vmem:[#allocation2 + $0x58] sm:$0xff]
        %v1664 = vld [vmem:[#allocation2 + $0x60] sm:$0xff]
        %v1665 = vld [vmem:[#allocation2 + $0x68] sm:$0xff]
        %v1666 = vld [vmem:[#allocation2 + $0x70] sm:$0xff]
        %v1667 = vld [vmem:[#allocation2 + $0x78] sm:$0xff]
        %v1668 = vld [vmem:[#allocation8] sm:$0xff]
        %v1669 = vld [vmem:[#allocation8 + $0x8] sm:$0xff]
        %v1670 = vld [vmem:[#allocation8 + $0x10] sm:$0xff]
        %v1671 = vld [vmem:[#allocation8 + $0x18] sm:$0xff]
        %v1672 = vld [vmem:[#allocation8 + $0x20] sm:$0xff]
        %v1673 = vld [vmem:[#allocation8 + $0x28] sm:$0xff]
        %v1674 = vld [vmem:[#allocation8 + $0x30] sm:$0xff]
        %v1675 = vld [vmem:[#allocation8 + $0x38] sm:$0xff]
        %v1676 = vld [vmem:[#allocation8 + $0x40] sm:$0xff]
        %v1677 = vld [vmem:[#allocation8 + $0x48] sm:$0xff]
        %v1678 = vld [vmem:[#allocation8 + $0x50] sm:$0xff]
        %v1679 = vld [vmem:[#allocation8 + $0x58] sm:$0xff]
        %v1680 = vld [vmem:[#allocation8 + $0x60] sm:$0xff]
        %v1681 = vld [vmem:[#allocation8 + $0x68] sm:$0xff]
        %v1682 = vld [vmem:[#allocation8 + $0x70] sm:$0xff]
        %v1683 = vld [vmem:[#allocation8 + $0x78] sm:$0xff]
        %v1684 = vld [vmem:[#allocation8 + $0x80] sm:$0xff]
        %v1685 = vld [vmem:[#allocation8 + $0x88] sm:$0xff]
        %v1686 = vld [vmem:[#allocation8 + $0x90] sm:$0xff]
        %v1687 = vld [vmem:[#allocation8 + $0x98] sm:$0xff]
        %v1688 = vld [vmem:[#allocation8 + $0xa0] sm:$0xff]
        %v1689 = vld [vmem:[#allocation8 + $0xa8] sm:$0xff]
        %v1690 = vld [vmem:[#allocation8 + $0xb0] sm:$0xff]
        %v1691 = vld [vmem:[#allocation8 + $0xb8] sm:$0xff]
        %v1692 = vld [vmem:[#allocation8 + $0xc0] sm:$0xff]
        %v1693 = vld [vmem:[#allocation8 + $0xc8] sm:$0xff]
        %v1694 = vld [vmem:[#allocation8 + $0xd0] sm:$0xff]
        %v1695 = vld [vmem:[#allocation8 + $0xd8] sm:$0xff]
        %v1696 = vld [vmem:[#allocation8 + $0xe0] sm:$0xff]
        %v1697 = vld [vmem:[#allocation8 + $0xe8] sm:$0xff]
        %v1698 = vld [vmem:[#allocation8 + $0xf0] sm:$0xff]
        %v1699 = vld [vmem:[#allocation8 + $0xf8] sm:$0xff]
        %v1700 = vld [vmem:[#allocation8 + $0x100] sm:$0xff]
        %v1701 = vld [vmem:[#allocation8 + $0x108] sm:$0xff]
        %v1702 = vld [vmem:[#allocation8 + $0x110] sm:$0xff]
        %v1703 = vld [vmem:[#allocation8 + $0x118] sm:$0xff]
        %v1704 = vld [vmem:[#allocation8 + $0x120] sm:$0xff]
        %v1705 = vld [vmem:[#allocation8 + $0x128] sm:$0xff]
        %v1706 = vld [vmem:[#allocation8 + $0x130] sm:$0xff]
        %v1707 = vld [vmem:[#allocation8 + $0x138] sm:$0xff]
        %v1708 = vld [vmem:[#allocation8 + $0x140] sm:$0xff]
        %v1709 = vld [vmem:[#allocation8 + $0x148] sm:$0xff]
        %v1710 = vld [vmem:[#allocation8 + $0x150] sm:$0xff]
        %v1711 = vld [vmem:[#allocation8 + $0x158] sm:$0xff]
        %v1712 = vld [vmem:[#allocation8 + $0x160] sm:$0xff]
        %v1713 = vld [vmem:[#allocation8 + $0x168] sm:$0xff]
        %v1714 = vld [vmem:[#allocation8 + $0x170] sm:$0xff]
        %v1715 = vld [vmem:[#allocation8 + $0x178] sm:$0xff]
        %v1716 = vld [vmem:[#allocation8 + $0x180] sm:$0xff]
        %v1717 = vld [vmem:[#allocation8 + $0x188] sm:$0xff]
        %v1718 = vld [vmem:[#allocation8 + $0x190] sm:$0xff]
        %v1719 = vld [vmem:[#allocation8 + $0x198] sm:$0xff]
        %v1720 = vld [vmem:[#allocation8 + $0x1a0] sm:$0xff]
        %v1721 = vld [vmem:[#allocation8 + $0x1a8] sm:$0xff]
        %v1722 = vld [vmem:[#allocation8 + $0x1b0] sm:$0xff]
        %v1723 = vld [vmem:[#allocation8 + $0x1b8] sm:$0xff]
        %v1724 = vld [vmem:[#allocation8 + $0x1c0] sm:$0xff]
        %v1725 = vld [vmem:[#allocation8 + $0x1c8] sm:$0xff]
        %v1726 = vld [vmem:[#allocation8 + $0x1d0] sm:$0xff]
        %v1727 = vld [vmem:[#allocation8 + $0x1d8] sm:$0xff]
        %v1728 = vld [vmem:[#allocation8 + $0x1e0] sm:$0xff]
        %v1729 = vld [vmem:[#allocation8 + $0x1e8] sm:$0xff]
        %v1730 = vld [vmem:[#allocation8 + $0x1f0] sm:$0xff]
        %v1731 = vld [vmem:[#allocation8 + $0x1f8] sm:$0xff]
        %v1796 = vunpack.c.l.b16 %v1668
        %v1797 = vunpack.c.h.b16 %v1668
        %v1798 = vunpack.c.l.b16 %v1669
        %v1799 = vunpack.c.h.b16 %v1669
        %v1800 = vunpack.c.l.b16 %v1670
        %v1801 = vunpack.c.h.b16 %v1670
        %v1802 = vunpack.c.l.b16 %v1671
        %v1803 = vunpack.c.h.b16 %v1671
        %v1804 = vunpack.c.l.b16 %v1672
        %v1805 = vunpack.c.h.b16 %v1672
        %v1806 = vunpack.c.l.b16 %v1673
        %v1807 = vunpack.c.h.b16 %v1673
        %v1808 = vunpack.c.l.b16 %v1674
        %v1809 = vunpack.c.h.b16 %v1674
        %v1810 = vunpack.c.l.b16 %v1675
        %v1811 = vunpack.c.h.b16 %v1675
        %v1812 = vunpack.c.l.b16 %v1676
        %v1813 = vunpack.c.h.b16 %v1676
        %v1814 = vunpack.c.l.b16 %v1677
        %v1815 = vunpack.c.h.b16 %v1677
        %v1816 = vunpack.c.l.b16 %v1678
        %v1817 = vunpack.c.h.b16 %v1678
        %v1818 = vunpack.c.l.b16 %v1679
        %v1819 = vunpack.c.h.b16 %v1679
        %v1820 = vunpack.c.l.b16 %v1680
        %v1821 = vunpack.c.h.b16 %v1680
        %v1822 = vunpack.c.l.b16 %v1681
        %v1823 = vunpack.c.h.b16 %v1681
        %v1824 = vunpack.c.l.b16 %v1682
        %v1825 = vunpack.c.h.b16 %v1682
        %v1826 = vunpack.c.l.b16 %v1683
        %v1827 = vunpack.c.h.b16 %v1683
        %v1828 = vunpack.c.l.b16 %v1684
        %v1829 = vunpack.c.h.b16 %v1684
        %v1830 = vunpack.c.l.b16 %v1685
        %v1831 = vunpack.c.h.b16 %v1685
        %v1832 = vunpack.c.l.b16 %v1686
        %v1833 = vunpack.c.h.b16 %v1686
        %v1834 = vunpack.c.l.b16 %v1687
        %v1835 = vunpack.c.h.b16 %v1687
        %v1836 = vunpack.c.l.b16 %v1688
        %v1837 = vunpack.c.h.b16 %v1688
        %v1838 = vunpack.c.l.b16 %v1689
        %v1839 = vunpack.c.h.b16 %v1689
        %v1840 = vunpack.c.l.b16 %v1690
        %v1841 = vunpack.c.h.b16 %v1690
        %v1842 = vunpack.c.l.b16 %v1691
        %v1843 = vunpack.c.h.b16 %v1691
        %v1844 = vunpack.c.l.b16 %v1692
        %v1845 = vunpack.c.h.b16 %v1692
        %v1846 = vunpack.c.l.b16 %v1693
        %v1847 = vunpack.c.h.b16 %v1693
        %v1848 = vunpack.c.l.b16 %v1694
        %v1849 = vunpack.c.h.b16 %v1694
        %v1850 = vunpack.c.l.b16 %v1695
        %v1851 = vunpack.c.h.b16 %v1695
        %v1852 = vunpack.c.l.b16 %v1696
        %v1853 = vunpack.c.h.b16 %v1696
        %v1854 = vunpack.c.l.b16 %v1697
        %v1855 = vunpack.c.h.b16 %v1697
        %v1856 = vunpack.c.l.b16 %v1698
        %v1857 = vunpack.c.h.b16 %v1698
        %v1858 = vunpack.c.l.b16 %v1699
        %v1859 = vunpack.c.h.b16 %v1699
        %v1860 = vunpack.c.l.b16 %v1700
        %v1861 = vunpack.c.h.b16 %v1700
        %v1862 = vunpack.c.l.b16 %v1701
        %v1863 = vunpack.c.h.b16 %v1701
        %v1864 = vunpack.c.l.b16 %v1702
        %v1865 = vunpack.c.h.b16 %v1702
        %v1866 = vunpack.c.l.b16 %v1703
        %v1867 = vunpack.c.h.b16 %v1703
        %v1868 = vunpack.c.l.b16 %v1704
        %v1869 = vunpack.c.h.b16 %v1704
        %v1870 = vunpack.c.l.b16 %v1705
        %v1871 = vunpack.c.h.b16 %v1705
        %v1872 = vunpack.c.l.b16 %v1706
        %v1873 = vunpack.c.h.b16 %v1706
        %v1874 = vunpack.c.l.b16 %v1707
        %v1875 = vunpack.c.h.b16 %v1707
        %v1876 = vunpack.c.l.b16 %v1708
        %v1877 = vunpack.c.h.b16 %v1708
        %v1878 = vunpack.c.l.b16 %v1709
        %v1879 = vunpack.c.h.b16 %v1709
        %v1880 = vunpack.c.l.b16 %v1710
        %v1881 = vunpack.c.h.b16 %v1710
        %v1882 = vunpack.c.l.b16 %v1711
        %v1883 = vunpack.c.h.b16 %v1711
        %v1884 = vunpack.c.l.b16 %v1712
        %v1885 = vunpack.c.h.b16 %v1712
        %v1886 = vunpack.c.l.b16 %v1713
        %v1887 = vunpack.c.h.b16 %v1713
        %v1888 = vunpack.c.l.b16 %v1714
        %v1889 = vunpack.c.h.b16 %v1714
        %v1890 = vunpack.c.l.b16 %v1715
        %v1891 = vunpack.c.h.b16 %v1715
        %v1892 = vunpack.c.l.b16 %v1716
        %v1893 = vunpack.c.h.b16 %v1716
        %v1894 = vunpack.c.l.b16 %v1717
        %v1895 = vunpack.c.h.b16 %v1717
        %v1896 = vunpack.c.l.b16 %v1718
        %v1897 = vunpack.c.h.b16 %v1718
        %v1898 = vunpack.c.l.b16 %v1719
        %v1899 = vunpack.c.h.b16 %v1719
        %v1900 = vunpack.c.l.b16 %v1720
        %v1901 = vunpack.c.h.b16 %v1720
        %v1902 = vunpack.c.l.b16 %v1721
        %v1903 = vunpack.c.h.b16 %v1721
        %v1904 = vunpack.c.l.b16 %v1722
        %v1905 = vunpack.c.h.b16 %v1722
        %v1906 = vunpack.c.l.b16 %v1723
        %v1907 = vunpack.c.h.b16 %v1723
        %v1908 = vunpack.c.l.b16 %v1724
        %v1909 = vunpack.c.h.b16 %v1724
        %v1910 = vunpack.c.l.b16 %v1725
        %v1911 = vunpack.c.h.b16 %v1725
        %v1912 = vunpack.c.l.b16 %v1726
        %v1913 = vunpack.c.h.b16 %v1726
        %v1914 = vunpack.c.l.b16 %v1727
        %v1915 = vunpack.c.h.b16 %v1727
        %v1916 = vunpack.c.l.b16 %v1728
        %v1917 = vunpack.c.h.b16 %v1728
        %v1918 = vunpack.c.l.b16 %v1729
        %v1919 = vunpack.c.h.b16 %v1729
        %v1920 = vunpack.c.l.b16 %v1730
        %v1921 = vunpack.c.h.b16 %v1730
        %v1922 = vunpack.c.l.b16 %v1731
        %v1923 = vunpack.c.h.b16 %v1731
        %v1924 = vpack.c.b16 %v1798, %v1796
        %v1925 = vpack.c.b16 %v1799, %v1797
        %v1926 = vpack.c.b16 %v1802, %v1800
        %v1927 = vpack.c.b16 %v1803, %v1801
        %v1928 = vpack.c.b16 %v1806, %v1804
        %v1929 = vpack.c.b16 %v1807, %v1805
        %v1930 = vpack.c.b16 %v1810, %v1808
        %v1931 = vpack.c.b16 %v1811, %v1809
        %v1932 = vpack.c.b16 %v1814, %v1812
        %v1933 = vpack.c.b16 %v1815, %v1813
        %v1934 = vpack.c.b16 %v1818, %v1816
        %v1935 = vpack.c.b16 %v1819, %v1817
        %v1936 = vpack.c.b16 %v1822, %v1820
        %v1937 = vpack.c.b16 %v1823, %v1821
        %v1938 = vpack.c.b16 %v1826, %v1824
        %v1939 = vpack.c.b16 %v1827, %v1825
        %v1940 = vpack.c.b16 %v1830, %v1828
        %v1941 = vpack.c.b16 %v1831, %v1829
        %v1942 = vpack.c.b16 %v1834, %v1832
        %v1943 = vpack.c.b16 %v1835, %v1833
        %v1944 = vpack.c.b16 %v1838, %v1836
        %v1945 = vpack.c.b16 %v1839, %v1837
        %v1946 = vpack.c.b16 %v1842, %v1840
        %v1947 = vpack.c.b16 %v1843, %v1841
        %v1948 = vpack.c.b16 %v1846, %v1844
        %v1949 = vpack.c.b16 %v1847, %v1845
        %v1950 = vpack.c.b16 %v1850, %v1848
        %v1951 = vpack.c.b16 %v1851, %v1849
        %v1952 = vpack.c.b16 %v1854, %v1852
        %v1953 = vpack.c.b16 %v1855, %v1853
        %v1954 = vpack.c.b16 %v1858, %v1856
        %v1955 = vpack.c.b16 %v1859, %v1857
        %v1956 = vpack.c.b16 %v1862, %v1860
        %v1957 = vpack.c.b16 %v1863, %v1861
        %v1958 = vpack.c.b16 %v1866, %v1864
        %v1959 = vpack.c.b16 %v1867, %v1865
        %v1960 = vpack.c.b16 %v1870, %v1868
        %v1961 = vpack.c.b16 %v1871, %v1869
        %v1962 = vpack.c.b16 %v1874, %v1872
        %v1963 = vpack.c.b16 %v1875, %v1873
        %v1964 = vpack.c.b16 %v1878, %v1876
        %v1965 = vpack.c.b16 %v1879, %v1877
        %v1966 = vpack.c.b16 %v1882, %v1880
        %v1967 = vpack.c.b16 %v1883, %v1881
        %v1968 = vpack.c.b16 %v1886, %v1884
        %v1969 = vpack.c.b16 %v1887, %v1885
        %v1970 = vpack.c.b16 %v1890, %v1888
        %v1971 = vpack.c.b16 %v1891, %v1889
        %v1972 = vpack.c.b16 %v1894, %v1892
        %v1973 = vpack.c.b16 %v1895, %v1893
        %v1974 = vpack.c.b16 %v1898, %v1896
        %v1975 = vpack.c.b16 %v1899, %v1897
        %v1976 = vpack.c.b16 %v1902, %v1900
        %v1977 = vpack.c.b16 %v1903, %v1901
        %v1978 = vpack.c.b16 %v1906, %v1904
        %v1979 = vpack.c.b16 %v1907, %v1905
        %v1980 = vpack.c.b16 %v1910, %v1908
        %v1981 = vpack.c.b16 %v1911, %v1909
        %v1982 = vpack.c.b16 %v1914, %v1912
        %v1983 = vpack.c.b16 %v1915, %v1913
        %v1984 = vpack.c.b16 %v1918, %v1916
        %v1985 = vpack.c.b16 %v1919, %v1917
        %v1986 = vpack.c.b16 %v1922, %v1920
        %v1987 = vpack.c.b16 %v1923, %v1921
        %2052 = vmatprep.subr.bf16.mxu0 %v1939
        %2053 = vmatpush1.bf16.msra.mxu0 %v1938
        %2054 = vmatprep.subr.bf16.mxu0 %v1937
        %2055 = vmatpush1.bf16.msra.mxu0 %v1936
        %2056 = vmatprep.subr.bf16.mxu0 %v1935
        %2057 = vmatpush1.bf16.msra.mxu0 %v1934
        %2058 = vmatprep.subr.bf16.mxu0 %v1933
        %2059 = vmatpush1.bf16.msra.mxu0 %v1932
        %2060 = vmatprep.subr.bf16.mxu0 %v1931
        %2061 = vmatpush1.bf16.msra.mxu0 %v1930
        %2062 = vmatprep.subr.bf16.mxu0 %v1929
        %2063 = vmatpush1.bf16.msra.mxu0 %v1928
        %2064 = vmatprep.subr.bf16.mxu0 %v1927
        %2065 = vmatpush1.bf16.msra.mxu0 %v1926
        %2066 = vmatprep.subr.bf16.mxu0 %v1925
        %2067 = vmatpush1.bf16.msra.mxu0 %v1924
        %2068 = vmatprep.subr.bf16.mxu0 %v1955
        %2069 = vmatpush2.bf16.msra.mxu0 %v1954
        %2070 = vmatprep.subr.bf16.mxu0 %v1953
        %2071 = vmatpush2.bf16.msra.mxu0 %v1952
        %2072 = vmatprep.subr.bf16.mxu0 %v1951
        %2073 = vmatpush2.bf16.msra.mxu0 %v1950
        %2074 = vmatprep.subr.bf16.mxu0 %v1949
        %2075 = vmatpush2.bf16.msra.mxu0 %v1948
        %2076 = vmatprep.subr.bf16.mxu0 %v1947
        %2077 = vmatpush2.bf16.msra.mxu0 %v1946
        %2078 = vmatprep.subr.bf16.mxu0 %v1945
        %2079 = vmatpush2.bf16.msra.mxu0 %v1944
        %2080 = vmatprep.subr.bf16.mxu0 %v1943
        %2081 = vmatpush2.bf16.msra.mxu0 %v1942
        %2082 = vmatprep.subr.bf16.mxu0 %v1941
        %2083 = vmatpush2.bf16.msra.mxu0 %v1940
        %2084 = vmatprep.mubr.bf16.mxu0 %v1637
        %2085 = vmatmul.mubr.bf16.gmra.mxu0 %v1636
        %v2086 = vpop.f32.mrf.mxu0
        %v2087 = vadd.f32 0.0, %v2086
        %v2088 = vpop.f32.mrf.mxu0
        %v2089 = vadd.f32 0.0, %v2088
        %v2090 = vpop.f32.mrf.mxu0
        %v2091 = vadd.f32 0.0, %v2090
        %v2092 = vpop.f32.mrf.mxu0
        %v2093 = vadd.f32 0.0, %v2092
        %2094 = vmatprep.mubr.bf16.mxu0 %v1641
        %2095 = vmatmul.mubr.bf16.gmra.mxu0 %v1640
        %v2096 = vpop.f32.mrf.mxu0
        %v2097 = vadd.f32 0.0, %v2096
        %v2098 = vpop.f32.mrf.mxu0
        %v2099 = vadd.f32 0.0, %v2098
        %v2100 = vpop.f32.mrf.mxu0
        %v2101 = vadd.f32 0.0, %v2100
        %v2102 = vpop.f32.mrf.mxu0
        %v2103 = vadd.f32 0.0, %v2102
        %2104 = vmatprep.mubr.bf16.mxu0 %v1645
        %2105 = vmatmul.mubr.bf16.gmra.mxu0 %v1644
        %v2106 = vpop.f32.mrf.mxu0
        %v2107 = vadd.f32 0.0, %v2106
        %v2108 = vpop.f32.mrf.mxu0
        %v2109 = vadd.f32 0.0, %v2108
        %v2110 = vpop.f32.mrf.mxu0
        %v2111 = vadd.f32 0.0, %v2110
        %v2112 = vpop.f32.mrf.mxu0
        %v2113 = vadd.f32 0.0, %v2112
        %2114 = vmatprep.mubr.bf16.mxu0 %v1649
        %2115 = vmatmul.mubr.bf16.gmra.mxu0 %v1648
        %v2116 = vpop.f32.mrf.mxu0
        %v2117 = vadd.f32 0.0, %v2116
        %v2118 = vpop.f32.mrf.mxu0
        %v2119 = vadd.f32 0.0, %v2118
        %v2120 = vpop.f32.mrf.mxu0
        %v2121 = vadd.f32 0.0, %v2120
        %v2122 = vpop.f32.mrf.mxu0
        %v2123 = vadd.f32 0.0, %v2122
        %2124 = vdwg.mxu0
        %2125 = vmatprep.subr.bf16.mxu0 %v1971
        %2126 = vmatpush1.bf16.msra.mxu0 %v1970
        %2127 = vmatprep.subr.bf16.mxu0 %v1969
        %2128 = vmatpush1.bf16.msra.mxu0 %v1968
        %2129 = vmatprep.subr.bf16.mxu0 %v1967
        %2130 = vmatpush1.bf16.msra.mxu0 %v1966
        %2131 = vmatprep.subr.bf16.mxu0 %v1965
        %2132 = vmatpush1.bf16.msra.mxu0 %v1964
        %2133 = vmatprep.subr.bf16.mxu0 %v1963
        %2134 = vmatpush1.bf16.msra.mxu0 %v1962
        %2135 = vmatprep.subr.bf16.mxu0 %v1961
        %2136 = vmatpush1.bf16.msra.mxu0 %v1960
        %2137 = vmatprep.subr.bf16.mxu0 %v1959
        %2138 = vmatpush1.bf16.msra.mxu0 %v1958
        %2139 = vmatprep.subr.bf16.mxu0 %v1957
        %2140 = vmatpush1.bf16.msra.mxu0 %v1956
        %2141 = vmatprep.subr.bf16.mxu0 %v1987
        %2142 = vmatpush2.bf16.msra.mxu0 %v1986
        %2143 = vmatprep.subr.bf16.mxu0 %v1985
        %2144 = vmatpush2.bf16.msra.mxu0 %v1984
        %2145 = vmatprep.subr.bf16.mxu0 %v1983
        %2146 = vmatpush2.bf16.msra.mxu0 %v1982
        %2147 = vmatprep.subr.bf16.mxu0 %v1981
        %2148 = vmatpush2.bf16.msra.mxu0 %v1980
        %2149 = vmatprep.subr.bf16.mxu0 %v1979
        %2150 = vmatpush2.bf16.msra.mxu0 %v1978
        %2151 = vmatprep.subr.bf16.mxu0 %v1977
        %2152 = vmatpush2.bf16.msra.mxu0 %v1976
        %2153 = vmatprep.subr.bf16.mxu0 %v1975
        %2154 = vmatpush2.bf16.msra.mxu0 %v1974
        %2155 = vmatprep.subr.bf16.mxu0 %v1973
        %2156 = vmatpush2.bf16.msra.mxu0 %v1972
        %2157 = vmatprep.mubr.bf16.mxu0 %v1639
        %2158 = vmatmul.mubr.bf16.gmra.mxu0 %v1638
        %v2159 = vpop.f32.mrf.mxu0
        %v2160 = vadd.f32 %v2087, %v2159
        %v2161 = vpop.f32.mrf.mxu0
        %v2162 = vadd.f32 %v2089, %v2161
        %v2163 = vpop.f32.mrf.mxu0
        %v2164 = vadd.f32 %v2091, %v2163
        %v2165 = vpop.f32.mrf.mxu0
        %v2166 = vadd.f32 %v2093, %v2165
        %2167 = vmatprep.mubr.bf16.mxu0 %v1643
        %2168 = vmatmul.mubr.bf16.gmra.mxu0 %v1642
        %v2169 = vpop.f32.mrf.mxu0
        %v2170 = vadd.f32 %v2097, %v2169
        %v2171 = vpop.f32.mrf.mxu0
        %v2172 = vadd.f32 %v2099, %v2171
        %v2173 = vpop.f32.mrf.mxu0
        %v2174 = vadd.f32 %v2101, %v2173
        %v2175 = vpop.f32.mrf.mxu0
        %v2176 = vadd.f32 %v2103, %v2175
        %2177 = vmatprep.mubr.bf16.mxu0 %v1647
        %2178 = vmatmul.mubr.bf16.gmra.mxu0 %v1646
        %v2179 = vpop.f32.mrf.mxu0
        %v2180 = vadd.f32 %v2107, %v2179
        %v2181 = vpop.f32.mrf.mxu0
        %v2182 = vadd.f32 %v2109, %v2181
        %v2183 = vpop.f32.mrf.mxu0
        %v2184 = vadd.f32 %v2111, %v2183
        %v2185 = vpop.f32.mrf.mxu0
        %v2186 = vadd.f32 %v2113, %v2185
        %2187 = vmatprep.mubr.bf16.mxu0 %v1651
        %2188 = vmatmul.mubr.bf16.gmra.mxu0 %v1650
        %v2189 = vpop.f32.mrf.mxu0
        %v2190 = vadd.f32 %v2117, %v2189
        %v2191 = vpop.f32.mrf.mxu0
        %v2192 = vadd.f32 %v2119, %v2191
        %v2193 = vpop.f32.mrf.mxu0
        %v2194 = vadd.f32 %v2121, %v2193
        %v2195 = vpop.f32.mrf.mxu0
        %v2196 = vadd.f32 %v2123, %v2195
        %2197 = vdwg.mxu0
        %v2198 = vadd.f32 %v1652, %v2160
        %v2199 = vadd.f32 %v1653, %v2162
        %v2200 = vadd.f32 %v1654, %v2164
        %v2201 = vadd.f32 %v1655, %v2166
        %v2202 = vadd.f32 %v1656, %v2170
        %v2203 = vadd.f32 %v1657, %v2172
        %v2204 = vadd.f32 %v1658, %v2174
        %v2205 = vadd.f32 %v1659, %v2176
        %v2206 = vadd.f32 %v1660, %v2180
        %v2207 = vadd.f32 %v1661, %v2182
        %v2208 = vadd.f32 %v1662, %v2184
        %v2209 = vadd.f32 %v1663, %v2186
        %v2210 = vadd.f32 %v1664, %v2190
        %v2211 = vadd.f32 %v1665, %v2192
        %v2212 = vadd.f32 %v1666, %v2194
        %v2213 = vadd.f32 %v1667, %v2196
        %2214 = vst [vmem:[#allocation2] sm:$0xff] %v2198
        %2215 = vst [vmem:[#allocation2 + $0x8] sm:$0xff] %v2199
        %2216 = vst [vmem:[#allocation2 + $0x10] sm:$0xff] %v2200
        %2217 = vst [vmem:[#allocation2 + $0x18] sm:$0xff] %v2201
        %2218 = vst [vmem:[#allocation2 + $0x20] sm:$0xff] %v2202
        %2219 = vst [vmem:[#allocation2 + $0x28] sm:$0xff] %v2203
        %2220 = vst [vmem:[#allocation2 + $0x30] sm:$0xff] %v2204
        %2221 = vst [vmem:[#allocation2 + $0x38] sm:$0xff] %v2205
        %2222 = vst [vmem:[#allocation2 + $0x40] sm:$0xff] %v2206
        %2223 = vst [vmem:[#allocation2 + $0x48] sm:$0xff] %v2207
        %2224 = vst [vmem:[#allocation2 + $0x50] sm:$0xff] %v2208
        %2225 = vst [vmem:[#allocation2 + $0x58] sm:$0xff] %v2209
        %2226 = vst [vmem:[#allocation2 + $0x60] sm:$0xff] %v2210
        %2227 = vst [vmem:[#allocation2 + $0x68] sm:$0xff] %v2211
        %2228 = vst [vmem:[#allocation2 + $0x70] sm:$0xff] %v2212
        %2229 = vst [vmem:[#allocation2 + $0x78] sm:$0xff] %v2213
        // Predicated region
        $region49: #{tpu_custom_call.1} parent=31 // pred_check
          %p2230 = pneg %p252
        $region50: #{tpu_custom_call.1} parent=31 // pred_check_branch
          %2232 = sbr.rel (%p2230) target = $region52
        $region51: #{tpu_custom_call.1} parent=31 // pred_region
          %v2233 = vld [vmem:[#allocation2] sm:$0xff]
          %v2234 = vld [vmem:[#allocation2 + $0x8] sm:$0xff]
          %v2235 = vld [vmem:[#allocation2 + $0x10] sm:$0xff]
          %v2236 = vld [vmem:[#allocation2 + $0x18] sm:$0xff]
          %v2237 = vld [vmem:[#allocation2 + $0x20] sm:$0xff]
          %v2238 = vld [vmem:[#allocation2 + $0x28] sm:$0xff]
          %v2239 = vld [vmem:[#allocation2 + $0x30] sm:$0xff]
          %v2240 = vld [vmem:[#allocation2 + $0x38] sm:$0xff]
          %v2241 = vld [vmem:[#allocation2 + $0x40] sm:$0xff]
          %v2242 = vld [vmem:[#allocation2 + $0x48] sm:$0xff]
          %v2243 = vld [vmem:[#allocation2 + $0x50] sm:$0xff]
          %v2244 = vld [vmem:[#allocation2 + $0x58] sm:$0xff]
          %v2245 = vld [vmem:[#allocation2 + $0x60] sm:$0xff]
          %v2246 = vld [vmem:[#allocation2 + $0x68] sm:$0xff]
          %v2247 = vld [vmem:[#allocation2 + $0x70] sm:$0xff]
          %v2248 = vld [vmem:[#allocation2 + $0x78] sm:$0xff]
          %v2249 = vpack.c.bf16 %v2235, %v2233
          %v2250 = vpack.c.bf16 %v2236, %v2234
          %v2251 = vpack.c.bf16 %v2239, %v2237
          %v2252 = vpack.c.bf16 %v2240, %v2238
          %v2253 = vpack.c.bf16 %v2243, %v2241
          %v2254 = vpack.c.bf16 %v2244, %v2242
          %v2255 = vpack.c.bf16 %v2247, %v2245
          %v2256 = vpack.c.bf16 %v2248, %v2246
          %v2265 = vunpack.c.l.b16 %v2249
          %v2266 = vunpack.c.l.b16 %v2250
          %v2267 = vunpack.c.h.b16 %v2249
          %v2268 = vunpack.c.h.b16 %v2250
          %v2269 = vunpack.c.l.b16 %v2251
          %v2270 = vunpack.c.l.b16 %v2252
          %v2271 = vunpack.c.h.b16 %v2251
          %v2272 = vunpack.c.h.b16 %v2252
          %v2273 = vunpack.c.l.b16 %v2253
          %v2274 = vunpack.c.l.b16 %v2254
          %v2275 = vunpack.c.h.b16 %v2253
          %v2276 = vunpack.c.h.b16 %v2254
          %v2277 = vunpack.c.l.b16 %v2255
          %v2278 = vunpack.c.l.b16 %v2256
          %v2279 = vunpack.c.h.b16 %v2255
          %v2280 = vunpack.c.h.b16 %v2256
          %v2281 = vpack.c.b16 %v2266, %v2265
          %v2282 = vpack.c.b16 %v2268, %v2267
          %v2283 = vpack.c.b16 %v2270, %v2269
          %v2284 = vpack.c.b16 %v2272, %v2271
          %v2285 = vpack.c.b16 %v2274, %v2273
          %v2286 = vpack.c.b16 %v2276, %v2275
          %v2287 = vpack.c.b16 %v2278, %v2277
          %v2288 = vpack.c.b16 %v2280, %v2279
          %2297 = vst [vmem:[%s247] sm:$0xff] %v2281
          %2298 = vst [vmem:[%s247 + $0x8] sm:$0xff] %v2282
          %2299 = vst [vmem:[%s247 + $0x10] sm:$0xff] %v2283
          %2300 = vst [vmem:[%s247 + $0x18] sm:$0xff] %v2284
          %2301 = vst [vmem:[%s247 + $0x20] sm:$0xff] %v2285
          %2302 = vst [vmem:[%s247 + $0x28] sm:$0xff] %v2286
          %2303 = vst [vmem:[%s247 + $0x30] sm:$0xff] %v2287
          %2304 = vst [vmem:[%s247 + $0x38] sm:$0xff] %v2288
        $region52: #{tpu_custom_call.1} parent=31 // pred_fallthru
          _
        %s2305 = sand.u32 %s119, 1
        %s2306 = scalar_lea.sflag [#allocation5], %s2305
        %s2307 = sand.u32 %s119, 1
        %s2308 = smul.addr %s2307, 64
        %s2309 = scalar_lea.vmem [#allocation9], %s2308
        // Predicated region
        $region53: #{tpu_custom_call.1} parent=31 // pred_check
          %p2310 = pneg %p129
        $region54: #{tpu_custom_call.1} parent=31 // pred_check_branch
          %2312 = sbr.rel (%p2310) target = $region56
        $region55: #{tpu_custom_call.1} parent=31 // pred_region
          %s2313 = smul.u32 8, %s25
          %s2315 = ssub.s32 1024, 1024
          %2316 = vsyncadd %s2306, %s2315
          %s2317 = smul.addr %s2313, 2
          %s2318 = smul.addr %s2317, 64
          %s2319 = scalar_lea.hbm %s3, %s2318
          %s2320 = sshll.u32 %s2309, 4
          %s2321 = int_to_ptr.vmem [resolvable:$true] %s2320
          %2326 = dma.vmem_to_hbm [thread:$0]  %s2321, 1024, %s2319, %s2306, 128, 128, 8
        $region56: #{tpu_custom_call.1} parent=31 // pred_fallthru
          _
      $region32: #{tpu_custom_call.1} parent=5 // pred_fallthru
        _
      %p2327 = scmp.le.s32.totalorder 2, %s16
      // Predicated region
      $region57: #{tpu_custom_call.1} parent=5 // pred_check
        %p2328 = pneg %p2327
      $region58: #{tpu_custom_call.1} parent=5 // pred_check_branch
        %2330 = sbr.rel (%p2328) target = $region60
      $region59: #{tpu_custom_call.1} parent=5 // pred_region
        %s2331 = ssub.s32 %s16, 2
        // Predicated region
        $region61: #{tpu_custom_call.1} parent=59 // pred_check
          %p2332 = pneg %p135
        $region62: #{tpu_custom_call.1} parent=59 // pred_check_branch
          %2334 = sbr.rel (%p2332) target = $region64
        $region63: #{tpu_custom_call.1} parent=59 // pred_region
          %s2335 = sand.u32 %s120, 1
          %s2336 = scalar_lea.sflag [#allocation5], %s2335
          %s2337 = sand.u32 %s120, 1
          %s2338 = smul.addr %s2337, 64
          %s2339 = scalar_lea.vmem [#allocation9], %s2338
          %2340 = dma.done %s2336, 1024
        $region64: #{tpu_custom_call.1} parent=59 // pred_fallthru
          _
      $region60: #{tpu_custom_call.1} parent=5 // pred_fallthru
        _
    $region6: #{tpu_custom_call.1} parent=1 // loop_footer
      %s20 = sadd.s32 1, %s16
    $region7: #{tpu_custom_call.1} parent=1 // loop_footer_branch
      %15 = sbr.rel target = $region3
    $region8: #{tpu_custom_call.1} parent=1 // loop_exit
      _
    %2341 = vsyncpa [#allocation4], 1
    %s2342 = scalar_lea.sflag [#allocation4], 1
    %2343 = vsyncpa %s2342, 1
    %2344 = vsyncpa [#allocation7], 1
    %2345 = vsyncpa [#allocation5], 1
    %s2346 = scalar_lea.sflag [#allocation5], 1
    %2347 = vsyncpa %s2346, 1

</llo_original>
